<compile_context>
chip_gen: v7x
topology: tpu7x:2x2x1
jax: 0.10.0
libtpu: 0.0.40
codegen_flags: <defaults>
</compile_context>

<pallas_src>
import functools

import jax
import jax.numpy as jnp
from jax.experimental import pallas as pl
from jax.experimental.pallas import tpu as pltpu


def _round_up(x, m):
    return (x + m - 1) // m * m


def _voxelization_kernel(feat_ref, coords_ld_ref, coords_pm_ref,
                         vox_ref, nc_ref, idx_ref, *,
                         rx, ry, rz, n_valid, tile_v, eps, normalize, count_row):
    v = pl.program_id(1)

    # ---- once per batch (v == 0): normalized coords + per-point voxel ids ----
    @pl.when(v == 0)
    def _compute_norm_and_index():
        coords = coords_ld_ref[0]                         # (3, N_pad) lane-dense
        n_pad = coords.shape[1]
        inv_n = 1.0 / float(n_valid)

        lane = jax.lax.broadcasted_iota(jnp.int32, (1, n_pad), 1)
        valid = (lane < n_valid).astype(jnp.float32)      # (1, N_pad) padded-point mask

        mean = jnp.sum(coords * valid, axis=1, keepdims=True) * inv_n   # (3, 1)
        nc = coords - mean                                              # (3, N_pad)

        if normalize:
            sq = nc * nc * valid
            norms = jnp.sqrt(jnp.sum(sq, axis=1, keepdims=True))        # (3, 1)
            mx = jnp.maximum(jnp.maximum(norms[0:1, :], norms[1:2, :]), norms[2:3, :])
            denom = mx * 2.0 + eps                                      # (1, 1)
            nc = nc / denom + 0.5
        else:
            denom = None
            nc = (nc + 1.0) * 0.5

        x = jnp.clip(nc[0:1, :] * float(rx), 0.0, float(rx - 1))
        y = jnp.clip(nc[1:2, :] * float(ry), 0.0, float(ry - 1))
        z = jnp.clip(nc[2:3, :] * float(rz), 0.0, float(rz - 1))
        nc_ref[0] = jnp.concatenate([x, y, z], axis=0)                  # (3, N_pad)

        # Point-major copy of the same arithmetic (identical op order -> identical
        # rounding) so the voxel id is produced on the sublane axis with only
        # elementwise VPU ops — no in-kernel transpose/relayout.
        coords_pm = coords_pm_ref[0]                                    # (N_pad, 3)

        def scaled_col(a, r):
            c = coords_pm[:, a:a + 1] - mean[a:a + 1, 0:1]              # (N_pad, 1)
            if normalize:
                c = c / denom + 0.5
            else:
                c = (c + 1.0) * 0.5
            return jnp.clip(c * float(r), 0.0, float(r - 1))

        vx = jnp.round(scaled_col(0, rx))
        vy = jnp.round(scaled_col(1, ry))
        vz = jnp.round(scaled_col(2, rz))
        idx_f = (vx * float(ry) + vy) * float(rz) + vz                  # (N_pad, 1)

        row = jax.lax.broadcasted_iota(jnp.int32, (n_pad, 1), 0)
        # Padded points get idx = -1 so they never hit any voxel tile.
        idx_ref[...] = jnp.where(row < n_valid, idx_f.astype(jnp.int32), -1)

    # ---- every (batch, voxel-tile) step: one-hot slab matmul ----
    feat = feat_ref[0]                                                  # (C_pad, N_pad)
    n_pad = feat.shape[1]

    col = jax.lax.broadcasted_iota(jnp.int32, (n_pad, tile_v), 1) + v * tile_v
    onehot = (col == idx_ref[...]).astype(jnp.float32)                  # (N_pad, TV)

    sums = jnp.dot(feat, onehot, preferred_element_type=jnp.float32)    # (C_pad, TV)
    counts = sums[count_row:count_row + 1, :]                           # (1, TV) ones-row
    inv = 1.0 / jnp.maximum(counts, 1.0)                                # TV reciprocals
    vox_ref[0] = sums * inv                                             # broadcast mult


def _choose_tile_v(V, n_pad, c_pad, budget_bytes=24 * 1024 * 1024):
    """Pick a voxel-tile width that keeps the one-hot slab + tiles inside VMEM."""
    fixed = 4 * (2 * c_pad * n_pad + 6 * 8 * n_pad + 128 * n_pad)
    avail = max(budget_bytes - fixed, 2 * 1024 * 1024)
    per_col = 4 * (2 * n_pad + 2 * c_pad)   # one-hot column + temps + out double buffer
    tv = max(128, (avail // per_col) // 128 * 128)
    return V if V <= tv else int(tv)


def _vmem_estimate(n_pad, c_pad, tile_v):
    f32 = 4
    feat = 2 * c_pad * n_pad * f32                    # double-buffered features
    coords_ld = 2 * 8 * n_pad * f32                   # (3, N) padded to 8 sublanes
    coords_pm = 2 * (n_pad // 8) * 8 * 128 * f32      # (N, 3) lane-padded to 128
    nc_out = 2 * 8 * n_pad * f32
    vox_out = 2 * c_pad * tile_v * f32
    idx = (n_pad // 8) * 8 * 128 * f32
    onehot = 2 * n_pad * tile_v * f32                 # one-hot slab + compiler temps
    return feat + coords_ld + coords_pm + nc_out + vox_out + idx + onehot


def voxelization(features, coords, rx, ry=1, rz=1, normalize=True, eps=0.0,
                 tile_v=None):
    """Pallas TPU implementation of Voxelization.forward.

    features: (B, C, N) float32
    coords:   (B, N, 3) float32
    returns:  (vox (B, C, rx, ry, rz), norm_coords (B, N, 3))
    """
    features = jnp.asarray(features, jnp.float32)
    coords = jnp.asarray(coords, jnp.float32)
    B, C, N = features.shape
    assert coords.shape == (B, N, 3)
    V = rx * ry * rz
    assert V < (1 << 24), "voxel index computed in f32 requires V < 2^24"

    N_pad = _round_up(N, 128)
    C_pad = _round_up(C + 1, 8)        # +1 for the all-ones counts row

    if tile_v is None:
        tile_v = _choose_tile_v(V, N_pad, C_pad)
    if tile_v >= V:
        tile_v = V
    else:
        tile_v = max(128, (tile_v // 128) * 128)
    nv = -(-V // tile_v)
    V_pad = nv * tile_v

    # Pack features: rows [0, C) = features, row C = ones (counts), rest zero.
    feat_packed = jnp.concatenate([features, jnp.ones((B, 1, N), jnp.float32)], axis=1)
    feat_packed = jnp.pad(feat_packed,
                          ((0, 0), (0, C_pad - (C + 1)), (0, N_pad - N)))

    coords_ld = jnp.pad(jnp.transpose(coords, (0, 2, 1)),
                        ((0, 0), (0, 0), (0, N_pad - N)))            # (B, 3, N_pad)
    coords_pm = jnp.pad(coords, ((0, 0), (0, N_pad - N), (0, 0)))    # (B, N_pad, 3)

    kernel = functools.partial(
        _voxelization_kernel, rx=rx, ry=ry, rz=rz, n_valid=N, tile_v=tile_v,
        eps=float(eps), normalize=bool(normalize), count_row=C)

    vmem_limit = int(min(64 * 1024 * 1024,
                         max(32 * 1024 * 1024,
                             int(_vmem_estimate(N_pad, C_pad, tile_v) * 1.5))))

    vox_flat, nc_t = pl.pallas_call(
        kernel,
        out_shape=(
            jax.ShapeDtypeStruct((B, C_pad, V_pad), jnp.float32),
            jax.ShapeDtypeStruct((B, 3, N_pad), jnp.float32),
        ),
        grid_spec=pltpu.PrefetchScalarGridSpec(
            num_scalar_prefetch=0,
            grid=(B, nv),
            in_specs=[
                pl.BlockSpec((1, C_pad, N_pad), lambda b, v: (b, 0, 0)),
                pl.BlockSpec((1, 3, N_pad), lambda b, v: (b, 0, 0)),
                pl.BlockSpec((1, N_pad, 3), lambda b, v: (b, 0, 0)),
            ],
            out_specs=[
                pl.BlockSpec((1, C_pad, tile_v), lambda b, v: (b, 0, v)),
                pl.BlockSpec((1, 3, N_pad), lambda b, v: (b, 0, 0)),
            ],
            scratch_shapes=[pltpu.VMEM((N_pad, 1), jnp.int32)],
        ),
        compiler_params=pltpu.CompilerParams(
            dimension_semantics=("parallel", "arbitrary"),
            vmem_limit_bytes=vmem_limit),
    )(feat_packed, coords_ld, coords_pm)

    vox = vox_flat[:, :C, :V].reshape(B, C, rx, ry, rz)
    norm_coords = jnp.transpose(nc_t[:, :, :N], (0, 2, 1))
    return vox, norm_coords


def voxelization_ref(features, coords, rx, ry=1, rz=1, normalize=True, eps=0.0):
    """Pure-JAX reference mirroring the PyTorch forward."""
    mean = coords.mean(axis=1, keepdims=True)
    nc = coords - mean
    if normalize:
        per_axis_norm = jnp.sqrt(jnp.sum(nc * nc, axis=1, keepdims=True))   # (B,1,3)
        denom = per_axis_norm.max(axis=2, keepdims=True) * 2.0 + eps        # (B,1,1)
        nc = nc / denom + 0.5
    else:
        nc = (nc + 1.0) / 2.0
    r = jnp.array([rx, ry, rz], jnp.float32)
    nc = jnp.clip(nc * r, 0.0, r - 1.0)
    vox_c = jnp.round(nc).astype(jnp.int32)
    idx = (vox_c[..., 0] * ry + vox_c[..., 1]) * rz + vox_c[..., 2]          # (B,N)
    V = rx * ry * rz
    onehot = jax.nn.one_hot(idx, V, dtype=features.dtype)                    # (B,N,V)
    sums = jnp.einsum('bcn,bnv->bcv', features, onehot)
    counts = onehot.sum(axis=1, keepdims=True)                               # (B,1,V)
    out = sums / jnp.maximum(counts, 1.0)
    B, C, _ = features.shape
    return out.reshape(B, C, rx, ry, rz), nc


if __name__ == "__main__":
    key = jax.random.PRNGKey(0)
    kf, kc = jax.random.split(key)

    B, C, N = 2, 5, 200   # exercises channel padding (C+1 -> 8) and point padding (200 -> 256)
    # Quantize features so MXU bf16-pass products are exact and the f32 parity stays tight.
    features = jnp.round(jax.random.normal(kf, (B, C, N), dtype=jnp.float32) * 4.0) / 4.0
    coords = jax.random.normal(kc, (B, N, 3), dtype=jnp.float32)

    configs = [
        dict(rx=4, ry=4, rz=3, normalize=True, eps=0.0, tile_v=None),   # single V tile
        dict(rx=8, ry=8, rz=8, normalize=True, eps=0.0, tile_v=128),    # 4 V tiles (tiled path)
        dict(rx=4, ry=4, rz=3, normalize=False, eps=0.0, tile_v=None),  # non-normalized path
    ]
    for cfg in configs:
        tile_v = cfg.pop("tile_v")
        vox, nc = voxelization(features, coords, tile_v=tile_v, **cfg)
        vox = jax.block_until_ready(vox)
        nc = jax.block_until_ready(nc)

        vox_r, nc_r = voxelization_ref(features, coords, **cfg)
        assert vox.shape == (B, C, cfg["rx"], cfg["ry"], cfg["rz"]), cfg
        assert nc.shape == (B, N, 3), cfg
        assert jnp.allclose(nc, nc_r, rtol=1e-5, atol=1e-5), cfg
        assert jnp.allclose(vox, vox_r, rtol=1e-5, atol=1e-5), cfg

    print("KERNEL_OK")
</pallas_src>

<mosaic_0001>
module attributes {stable_mosaic.version = 11 : i64} {
  func.func @_voxelization_kernel(%arg0: i32, %arg1: i32, %arg2: memref<1x8x256xf32, #tpu.memory_space<vmem>>, %arg3: memref<1x3x256xf32, #tpu.memory_space<vmem>>, %arg4: memref<1x256x3xf32, #tpu.memory_space<vmem>>, %arg5: memref<1x8x48xf32, #tpu.memory_space<vmem>>, %arg6: memref<1x3x256xf32, #tpu.memory_space<vmem>>, %arg7: memref<256x1xi32, #tpu.memory_space<vmem>>) attributes {dimension_semantics = [#tpu.dimension_semantics<parallel>, #tpu.dimension_semantics<arbitrary>], iteration_bounds = array<i64: 2, 1>, scalar_prefetch = 0 : i64, scratch_operands = 1 : i64, tpu.core_type = #tpu.core_type<tc>, window_params = [{transform_indices = @transform_0, window_bounds = array<i64: 1, 8, 256>}, {transform_indices = @transform_1, window_bounds = array<i64: 1, 3, 256>}, {transform_indices = @transform_2, window_bounds = array<i64: 1, 256, 3>}, {transform_indices = @transform_3, window_bounds = array<i64: 1, 8, 48>}, {transform_indices = @transform_4, window_bounds = array<i64: 1, 3, 256>}]} {
    %c0_i32 = arith.constant 0 : i32
    %0 = arith.cmpi eq, %arg1, %c0_i32 : i32
    %1 = arith.extui %0 : i1 to i32
    %c0_i32_0 = arith.constant 0 : i32
    %2 = arith.cmpi ne, %1, %c0_i32_0 : i32
    scf.if %2 {
      %c0_10 = arith.constant 0 : index
      %c0_11 = arith.constant 0 : index
      %c0_12 = arith.constant 0 : index
      %25 = vector.load %arg3[%c0_10, %c0_11, %c0_12] : memref<1x3x256xf32, #tpu.memory_space<vmem>>, vector<1x3x256xf32>
      %26 = vector.shape_cast %25 : vector<1x3x256xf32> to vector<3x256xf32>
      %27 = tpu.iota {dimensions = array<i32: 1>} : vector<1x256xi32>
      %c200_i32 = arith.constant 200 : i32
      %28 = vector.broadcast %c200_i32 : i32 to vector<1x256xi32>
      %29 = arith.cmpi slt, %27, %28 : vector<1x256xi32>
      %30 = arith.extui %29 : vector<1x256xi1> to vector<1x256xi32>
      %31 = arith.sitofp %30 : vector<1x256xi32> to vector<1x256xf32>
      %32 = vector.broadcast %31 : vector<1x256xf32> to vector<3x256xf32>
      %33 = arith.mulf %26, %32 : vector<3x256xf32>
      %cst_13 = arith.constant dense<0.000000e+00> : vector<3xf32>
      %34 = vector.multi_reduction <add>, %33, %cst_13 [1] : vector<3x256xf32> to vector<3xf32>
      %35 = vector.shape_cast %34 : vector<3xf32> to vector<3x1xf32>
      %cst_14 = arith.constant 5.000000e-03 : f32
      %36 = vector.broadcast %cst_14 : f32 to vector<3x1xf32>
      %37 = arith.mulf %35, %36 : vector<3x1xf32>
      %38 = vector.broadcast %37 : vector<3x1xf32> to vector<3x256xf32>
      %39 = arith.subf %26, %38 : vector<3x256xf32>
      %40 = arith.mulf %39, %39 : vector<3x256xf32>
      %41 = vector.broadcast %31 : vector<1x256xf32> to vector<3x256xf32>
      %42 = arith.mulf %40, %41 : vector<3x256xf32>
      %cst_15 = arith.constant dense<0.000000e+00> : vector<3xf32>
      %43 = vector.multi_reduction <add>, %42, %cst_15 [1] : vector<3x256xf32> to vector<3xf32>
      %44 = vector.shape_cast %43 : vector<3xf32> to vector<3x1xf32>
      %45 = math.sqrt %44 : vector<3x1xf32>
      %46 = vector.extract_strided_slice %45 {offsets = [0, 0], sizes = [1, 1], strides = [1, 1]} : vector<3x1xf32> to vector<1x1xf32>
      %47 = vector.extract_strided_slice %45 {offsets = [1, 0], sizes = [1, 1], strides = [1, 1]} : vector<3x1xf32> to vector<1x1xf32>
      %48 = arith.maximumf %46, %47 : vector<1x1xf32>
      %49 = vector.extract_strided_slice %45 {offsets = [2, 0], sizes = [1, 1], strides = [1, 1]} : vector<3x1xf32> to vector<1x1xf32>
      %50 = arith.maximumf %48, %49 : vector<1x1xf32>
      %cst_16 = arith.constant 2.000000e+00 : f32
      %51 = vector.broadcast %cst_16 : f32 to vector<1x1xf32>
      %52 = arith.mulf %50, %51 : vector<1x1xf32>
      %cst_17 = arith.constant 0.000000e+00 : f32
      %53 = vector.broadcast %cst_17 : f32 to vector<1x1xf32>
      %54 = arith.addf %52, %53 : vector<1x1xf32>
      %55 = vector.broadcast %54 : vector<1x1xf32> to vector<3x256xf32>
      %56 = arith.divf %39, %55 : vector<3x256xf32>
      %cst_18 = arith.constant 5.000000e-01 : f32
      %57 = vector.broadcast %cst_18 : f32 to vector<3x256xf32>
      %58 = arith.addf %56, %57 : vector<3x256xf32>
      %59 = vector.extract_strided_slice %58 {offsets = [0, 0], sizes = [1, 256], strides = [1, 1]} : vector<3x256xf32> to vector<1x256xf32>
      %cst_19 = arith.constant 4.000000e+00 : f32
      %60 = vector.broadcast %cst_19 : f32 to vector<1x256xf32>
      %61 = arith.mulf %59, %60 : vector<1x256xf32>
      %cst_20 = arith.constant 0.000000e+00 : f32
      %cst_21 = arith.constant 3.000000e+00 : f32
      %62 = vector.broadcast %cst_20 : f32 to vector<1x256xf32>
      %63 = arith.maximumf %62, %61 : vector<1x256xf32>
      %64 = vector.broadcast %cst_21 : f32 to vector<1x256xf32>
      %65 = arith.minimumf %64, %63 : vector<1x256xf32>
      %66 = vector.extract_strided_slice %58 {offsets = [1, 0], sizes = [1, 256], strides = [1, 1]} : vector<3x256xf32> to vector<1x256xf32>
      %cst_22 = arith.constant 4.000000e+00 : f32
      %67 = vector.broadcast %cst_22 : f32 to vector<1x256xf32>
      %68 = arith.mulf %66, %67 : vector<1x256xf32>
      %cst_23 = arith.constant 0.000000e+00 : f32
      %cst_24 = arith.constant 3.000000e+00 : f32
      %69 = vector.broadcast %cst_23 : f32 to vector<1x256xf32>
      %70 = arith.maximumf %69, %68 : vector<1x256xf32>
      %71 = vector.broadcast %cst_24 : f32 to vector<1x256xf32>
      %72 = arith.minimumf %71, %70 : vector<1x256xf32>
      %73 = vector.extract_strided_slice %58 {offsets = [2, 0], sizes = [1, 256], strides = [1, 1]} : vector<3x256xf32> to vector<1x256xf32>
      %cst_25 = arith.constant 3.000000e+00 : f32
      %74 = vector.broadcast %cst_25 : f32 to vector<1x256xf32>
      %75 = arith.mulf %73, %74 : vector<1x256xf32>
      %cst_26 = arith.constant 0.000000e+00 : f32
      %cst_27 = arith.constant 2.000000e+00 : f32
      %76 = vector.broadcast %cst_26 : f32 to vector<1x256xf32>
      %77 = arith.maximumf %76, %75 : vector<1x256xf32>
      %78 = vector.broadcast %cst_27 : f32 to vector<1x256xf32>
      %79 = arith.minimumf %78, %77 : vector<1x256xf32>
      %80 = tpu.concatenate %65, %72, %79 in 0 : vector<1x256xf32>, vector<1x256xf32>, vector<1x256xf32> -> vector<3x256xf32>
      %c0_28 = arith.constant 0 : index
      %c0_29 = arith.constant 0 : index
      %c0_30 = arith.constant 0 : index
      %81 = vector.load %arg6[%c0_28, %c0_29, %c0_30] : memref<1x3x256xf32, #tpu.memory_space<vmem>>, vector<1x3x256xf32>
      %82 = vector.shape_cast %81 : vector<1x3x256xf32> to vector<3x256xf32>
      %83 = vector.shape_cast %80 : vector<3x256xf32> to vector<1x3x256xf32>
      tpu.vector_store %arg6[%c0_28, %c0_29, %c0_30], %83 {strides = array<i32>} : memref<1x3x256xf32, #tpu.memory_space<vmem>>, vector<1x3x256xf32>,
      %c0_31 = arith.constant 0 : index
      %c0_32 = arith.constant 0 : index
      %c0_33 = arith.constant 0 : index
      %84 = vector.load %arg4[%c0_31, %c0_32, %c0_33] : memref<1x256x3xf32, #tpu.memory_space<vmem>>, vector<1x256x3xf32>
      %85 = vector.shape_cast %84 : vector<1x256x3xf32> to vector<256x3xf32>
      %86 = vector.extract_strided_slice %85 {offsets = [0, 0], sizes = [256, 1], strides = [1, 1]} : vector<256x3xf32> to vector<256x1xf32>
      %87 = vector.extract_strided_slice %37 {offsets = [0, 0], sizes = [1, 1], strides = [1, 1]} : vector<3x1xf32> to vector<1x1xf32>
      %88 = vector.broadcast %87 : vector<1x1xf32> to vector<256x1xf32>
      %89 = arith.subf %86, %88 : vector<256x1xf32>
      %90 = vector.broadcast %54 : vector<1x1xf32> to vector<256x1xf32>
      %91 = arith.divf %89, %90 : vector<256x1xf32>
      %cst_34 = arith.constant 5.000000e-01 : f32
      %92 = vector.broadcast %cst_34 : f32 to vector<256x1xf32>
      %93 = arith.addf %91, %92 : vector<256x1xf32>
      %cst_35 = arith.constant 4.000000e+00 : f32
      %94 = vector.broadcast %cst_35 : f32 to vector<256x1xf32>
      %95 = arith.mulf %93, %94 : vector<256x1xf32>
      %cst_36 = arith.constant 0.000000e+00 : f32
      %cst_37 = arith.constant 3.000000e+00 : f32
      %96 = vector.broadcast %cst_36 : f32 to vector<256x1xf32>
      %97 = arith.maximumf %96, %95 : vector<256x1xf32>
      %98 = vector.broadcast %cst_37 : f32 to vector<256x1xf32>
      %99 = arith.minimumf %98, %97 : vector<256x1xf32>
      %100 = math.roundeven %99 : vector<256x1xf32>
      %101 = vector.extract_strided_slice %85 {offsets = [0, 1], sizes = [256, 1], strides = [1, 1]} : vector<256x3xf32> to vector<256x1xf32>
      %102 = vector.extract_strided_slice %37 {offsets = [1, 0], sizes = [1, 1], strides = [1, 1]} : vector<3x1xf32> to vector<1x1xf32>
      %103 = vector.broadcast %102 : vector<1x1xf32> to vector<256x1xf32>
      %104 = arith.subf %101, %103 : vector<256x1xf32>
      %105 = vector.broadcast %54 : vector<1x1xf32> to vector<256x1xf32>
      %106 = arith.divf %104, %105 : vector<256x1xf32>
      %cst_38 = arith.constant 5.000000e-01 : f32
      %107 = vector.broadcast %cst_38 : f32 to vector<256x1xf32>
      %108 = arith.addf %106, %107 : vector<256x1xf32>
      %cst_39 = arith.constant 4.000000e+00 : f32
      %109 = vector.broadcast %cst_39 : f32 to vector<256x1xf32>
      %110 = arith.mulf %108, %109 : vector<256x1xf32>
      %cst_40 = arith.constant 0.000000e+00 : f32
      %cst_41 = arith.constant 3.000000e+00 : f32
      %111 = vector.broadcast %cst_40 : f32 to vector<256x1xf32>
      %112 = arith.maximumf %111, %110 : vector<256x1xf32>
      %113 = vector.broadcast %cst_41 : f32 to vector<256x1xf32>
      %114 = arith.minimumf %113, %112 : vector<256x1xf32>
      %115 = math.roundeven %114 : vector<256x1xf32>
      %116 = vector.extract_strided_slice %85 {offsets = [0, 2], sizes = [256, 1], strides = [1, 1]} : vector<256x3xf32> to vector<256x1xf32>
      %117 = vector.extract_strided_slice %37 {offsets = [2, 0], sizes = [1, 1], strides = [1, 1]} : vector<3x1xf32> to vector<1x1xf32>
      %118 = vector.broadcast %117 : vector<1x1xf32> to vector<256x1xf32>
      %119 = arith.subf %116, %118 : vector<256x1xf32>
      %120 = vector.broadcast %54 : vector<1x1xf32> to vector<256x1xf32>
      %121 = arith.divf %119, %120 : vector<256x1xf32>
      %cst_42 = arith.constant 5.000000e-01 : f32
      %122 = vector.broadcast %cst_42 : f32 to vector<256x1xf32>
      %123 = arith.addf %121, %122 : vector<256x1xf32>
      %cst_43 = arith.constant 3.000000e+00 : f32
      %124 = vector.broadcast %cst_43 : f32 to vector<256x1xf32>
      %125 = arith.mulf %123, %124 : vector<256x1xf32>
      %cst_44 = arith.constant 0.000000e+00 : f32
      %cst_45 = arith.constant 2.000000e+00 : f32
      %126 = vector.broadcast %cst_44 : f32 to vector<256x1xf32>
      %127 = arith.maximumf %126, %125 : vector<256x1xf32>
      %128 = vector.broadcast %cst_45 : f32 to vector<256x1xf32>
      %129 = arith.minimumf %128, %127 : vector<256x1xf32>
      %130 = math.roundeven %129 : vector<256x1xf32>
      %cst_46 = arith.constant 4.000000e+00 : f32
      %131 = vector.broadcast %cst_46 : f32 to vector<256x1xf32>
      %132 = arith.mulf %100, %131 : vector<256x1xf32>
      %133 = arith.addf %132, %115 : vector<256x1xf32>
      %cst_47 = arith.constant 3.000000e+00 : f32
      %134 = vector.broadcast %cst_47 : f32 to vector<256x1xf32>
      %135 = arith.mulf %133, %134 : vector<256x1xf32>
      %136 = arith.addf %135, %130 : vector<256x1xf32>
      %137 = tpu.iota {dimensions = array<i32: 0>} : vector<256x1xi32>
      %c200_i32_48 = arith.constant 200 : i32
      %138 = vector.broadcast %c200_i32_48 : i32 to vector<256x1xi32>
      %139 = arith.cmpi slt, %137, %138 : vector<256x1xi32>
      %140 = arith.fptosi %136 : vector<256x1xf32> to vector<256x1xi32>
      %c-1_i32 = arith.constant -1 : i32
      %141 = vector.broadcast %c-1_i32 : i32 to vector<256x1xi32>
      %142 = arith.select %139, %140, %141 : vector<256x1xi1>, vector<256x1xi32>
      %c0_49 = arith.constant 0 : index
      %c0_50 = arith.constant 0 : index
      %143 = vector.load %arg7[%c0_49, %c0_50] : memref<256x1xi32, #tpu.memory_space<vmem>>, vector<256x1xi32>
      tpu.vector_store %arg7[%c0_49, %c0_50], %142 {strides = array<i32>} : memref<256x1xi32, #tpu.memory_space<vmem>>, vector<256x1xi32>,
    } else {
    }
    %c0 = arith.constant 0 : index
    %c0_1 = arith.constant 0 : index
    %c0_2 = arith.constant 0 : index
    %3 = vector.load %arg2[%c0, %c0_1, %c0_2] : memref<1x8x256xf32, #tpu.memory_space<vmem>>, vector<1x8x256xf32>
    %4 = vector.shape_cast %3 : vector<1x8x256xf32> to vector<8x256xf32>
    %5 = tpu.iota {dimensions = array<i32: 1>} : vector<256x48xi32>
    %c48_i32 = arith.constant 48 : i32
    %6 = arith.muli %arg1, %c48_i32 : i32
    %7 = vector.broadcast %6 : i32 to vector<256x48xi32>
    %8 = arith.addi %5, %7 : vector<256x48xi32>
    %c0_3 = arith.constant 0 : index
    %c0_4 = arith.constant 0 : index
    %9 = vector.load %arg7[%c0_3, %c0_4] : memref<256x1xi32, #tpu.memory_space<vmem>>, vector<256x1xi32>
    %10 = vector.broadcast %9 : vector<256x1xi32> to vector<256x48xi32>
    %11 = arith.cmpi eq, %8, %10 : vector<256x48xi32>
    %12 = arith.extui %11 : vector<256x48xi1> to vector<256x48xi32>
    %13 = arith.sitofp %12 : vector<256x48xi32> to vector<256x48xf32>
    %cst = arith.constant dense<0.000000e+00> : vector<8x48xf32>
    %14 = tpu.matmul %4, %13, %cst {dimension_numbers = #tpu.dot_dimension_numbers<[1], [0], [0], [1], [0, 0, 1, 1], [], []>} : vector<8x256xf32>, vector<256x48xf32>, vector<8x48xf32> -> vector<8x48xf32>
    %15 = vector.extract_strided_slice %14 {offsets = [5, 0], sizes = [1, 48], strides = [1, 1]} : vector<8x48xf32> to vector<1x48xf32>
    %cst_5 = arith.constant 1.000000e+00 : f32
    %16 = vector.broadcast %cst_5 : f32 to vector<1x48xf32>
    %17 = arith.maximumf %15, %16 : vector<1x48xf32>
    %cst_6 = arith.constant 1.000000e+00 : f32
    %18 = vector.broadcast %cst_6 : f32 to vector<1x48xf32>
    %19 = arith.divf %18, %17 : vector<1x48xf32>
    %20 = vector.broadcast %19 : vector<1x48xf32> to vector<8x48xf32>
    %21 = arith.mulf %14, %20 : vector<8x48xf32>
    %c0_7 = arith.constant 0 : index
    %c0_8 = arith.constant 0 : index
    %c0_9 = arith.constant 0 : index
    %22 = vector.load %arg5[%c0_7, %c0_8, %c0_9] : memref<1x8x48xf32, #tpu.memory_space<vmem>>, vector<1x8x48xf32>
    %23 = vector.shape_cast %22 : vector<1x8x48xf32> to vector<8x48xf32>
    %24 = vector.shape_cast %21 : vector<8x48xf32> to vector<1x8x48xf32>
    tpu.vector_store %arg5[%c0_7, %c0_8, %c0_9], %24 {strides = array<i32>} : memref<1x8x48xf32, #tpu.memory_space<vmem>>, vector<1x8x48xf32>,
    return
  }
  func.func @transform_0(%arg0: i32, %arg1: i32) -> (i32, i32, i32) {
    %c0_i32 = arith.constant 0 : i32
    %c0_i32_0 = arith.constant 0 : i32
    %c0_i32_1 = arith.constant 0 : i32
    return %arg0, %c0_i32, %c0_i32_0 : i32, i32, i32
  }
  func.func @transform_1(%arg0: i32, %arg1: i32) -> (i32, i32, i32) {
    %c0_i32 = arith.constant 0 : i32
    %c0_i32_0 = arith.constant 0 : i32
    %c0_i32_1 = arith.constant 0 : i32
    return %arg0, %c0_i32, %c0_i32_0 : i32, i32, i32
  }
  func.func @transform_2(%arg0: i32, %arg1: i32) -> (i32, i32, i32) {
    %c0_i32 = arith.constant 0 : i32
    %c0_i32_0 = arith.constant 0 : i32
    %c0_i32_1 = arith.constant 0 : i32
    return %arg0, %c0_i32, %c0_i32_0 : i32, i32, i32
  }
  func.func @transform_3(%arg0: i32, %arg1: i32) -> (i32, i32, i32) {
    %c0_i32 = arith.constant 0 : i32
    %c0_i32_0 = arith.constant 0 : i32
    return %arg0, %c0_i32, %arg1 : i32, i32, i32
  }
  func.func @transform_4(%arg0: i32, %arg1: i32) -> (i32, i32, i32) {
    %c0_i32 = arith.constant 0 : i32
    %c0_i32_0 = arith.constant 0 : i32
    %c0_i32_1 = arith.constant 0 : i32
    return %arg0, %c0_i32, %c0_i32_0 : i32, i32, i32
  }
}

</mosaic_0001>

<llo_original>
// kernel: tpu_custom_call.1
$region0: #{tpu_custom_call.1}
  #allocation0 [shape = 'u32[]', space=smem, size = 0x4, offset = 0x4, fixed_abs, tag = 'smem constant byte address 0x4 - core index']
  #allocation1 [shape = 'u32[144,128]{1,0:T(1,128)}', space=vmem, size = 0x12000, scoped, tag = 'internal scratch']
  #allocation2 [shape = 's32[256,1]{1,0:T(8,128)}', space=vmem, size = 0x20000, scoped, tag = 'scratch operand']
  %s0 = inlined_call_operand.vmem [shape: f32[2,8,256], index: 0, kind: input, shape index: {}]
  %s1 = inlined_call_operand.vmem [shape: f32[2,3,256], index: 1, kind: input, shape index: {}]
  %s2 = inlined_call_operand.vmem [shape: f32[2,256,3], index: 2, kind: input, shape index: {}]
  %s3 = inlined_call_operand.hbm [shape: f32[2,8,48], index: 3, kind: output, shape index: {0}]
  %s4 = inlined_call_operand.vmem [shape: f32[2,3,256], index: 4, kind: output, shape index: {1}]
  %5 = xla_tuple %s3, %s4
  %s6 = sld [smem:[#allocation0]]
  $region57: #{tpu_custom_call.1} parent=0
    _
  %s8 = ssub.s32 1, %s6
  %s9 = scalar_select 0, %s8, %s6
  $region1: #{tpu_custom_call.1} parent=0
    #allocation3 [shape = 'u8[8192]{0}', space=vmem, size = 0x2000, scoped, tag = 'output window, operand 0']
    #allocation4 [shape = 's32[2]{0}', space=sflag, size = 0x8, scoped, tag = 'scoped memory for tpu_custom_call.1']
    %10 = vsyncpa [#allocation4], 0
    %s11 = scalar_lea.sflag [#allocation4], 1
    %12 = vsyncpa %s11, 0
    loop: start=0, step=1, limit=4
    $region2: #{tpu_custom_call.1} parent=1 // loop_pre_header
      _
    $region3: #{tpu_custom_call.1} parent=1 // loop_header
      %s14 = sphi 0, %s18
      %p15 = scmp.ge.s32.totalorder %s14, 4
      %s21 = sphi 0, %s33
      %s22 = sphi 0, %s29
      %s23 = sphi 0, %s21
      %s24 = sphi 0, %s22
      %s25 = sphi 0, %s23
      %s26 = sphi 0, %s24
      %s36 = sphi 0, %s38
      %s39 = sphi 0, %s36
      %s40 = sphi 0, %s39
      %s56 = sphi 0, %s40
      %s62 = sphi 0, %s64
      %s65 = sphi 0, %s62
      %s66 = sphi 0, %s65
      %s82 = sphi 0, %s66
      %s88 = sphi 0, %s90
      %s91 = sphi 0, %s88
      %s92 = sphi 0, %s91
      %s108 = sphi 0, %s92
      %s116 = sphi 0, %s118
      %s119 = sphi 0, %s116
      %s120 = sphi 0, %s119
      %s136 = sphi 0, %s120
      %s142 = sphi 0, %s144
      %s145 = sphi 0, %s142
      %s146 = sphi 0, %s145
      %s162 = sphi 0, %s146
    $region4: #{tpu_custom_call.1} parent=1 // loop_header_branch
      %17 = sbr.rel (%p15) target = $region8
    $region5: #{tpu_custom_call.1} parent=1 // loop_body
      %s19 = ssub.s32 %s14, 1
      %s20 = ssub.s32 %s14, 2
      %s27 = sadd.s32 1, %s22
      %p28 = scmp.ge.s32.totalorder %s27, 1
      %s29 = scalar_select %p28, 0, %s27
      %s30 = sadd.s32 1, %s21
      %s31 = scalar_select %p28, %s30, %s21
      %p32 = scmp.ge.s32.totalorder %s31, 2
      %s33 = scalar_select %p32, 0, %s31
      %s34 = ssub.s32 %s21, %s33
      %p35 = scmp.eq.s32.totalorder %s34, 0
      %s37 = sadd.s32 %s36, 1
      %s38 = scalar_select %p35, %s36, %s37
      %p41 = pneg %p35
      %p42 = scmp.eq.s32.totalorder %s14, 1
      %p43 = por %p41, %p42
      %p44 = scmp.ne.s32.totalorder %s36, %s39
      %p45 = scmp.eq.s32.totalorder %s14, 0
      %p46 = por %p44, %p45
      %p47 = scmp.ne.s32.totalorder %s36, %s39
      %p48 = scmp.eq.s32.totalorder %s19, 1
      %p49 = por %p47, %p48
      %p50 = scmp.ne.s32.totalorder %s39, %s40
      %p51 = scmp.eq.s32.totalorder %s19, 0
      %p52 = por %p50, %p51
      %p53 = scmp.ne.s32.totalorder %s39, %s40
      %p54 = scmp.eq.s32.totalorder %s20, 1
      %p55 = por %p53, %p54
      %p57 = scmp.ne.s32.totalorder %s40, %s56
      %p58 = scmp.eq.s32.totalorder %s20, 0
      %p59 = por %p57, %p58
      %s60 = ssub.s32 %s21, %s33
      %p61 = scmp.eq.s32.totalorder %s60, 0
      %s63 = sadd.s32 %s62, 1
      %s64 = scalar_select %p61, %s62, %s63
      %p67 = pneg %p61
      %p68 = scmp.eq.s32.totalorder %s14, 1
      %p69 = por %p67, %p68
      %p70 = scmp.ne.s32.totalorder %s62, %s65
      %p71 = scmp.eq.s32.totalorder %s14, 0
      %p72 = por %p70, %p71
      %p73 = scmp.ne.s32.totalorder %s62, %s65
      %p74 = scmp.eq.s32.totalorder %s19, 1
      %p75 = por %p73, %p74
      %p76 = scmp.ne.s32.totalorder %s65, %s66
      %p77 = scmp.eq.s32.totalorder %s19, 0
      %p78 = por %p76, %p77
      %p79 = scmp.ne.s32.totalorder %s65, %s66
      %p80 = scmp.eq.s32.totalorder %s20, 1
      %p81 = por %p79, %p80
      %p83 = scmp.ne.s32.totalorder %s66, %s82
      %p84 = scmp.eq.s32.totalorder %s20, 0
      %p85 = por %p83, %p84
      %s86 = ssub.s32 %s21, %s33
      %p87 = scmp.eq.s32.totalorder %s86, 0
      %s89 = sadd.s32 %s88, 1
      %s90 = scalar_select %p87, %s88, %s89
      %p93 = pneg %p87
      %p94 = scmp.eq.s32.totalorder %s14, 1
      %p95 = por %p93, %p94
      %p96 = scmp.ne.s32.totalorder %s88, %s91
      %p97 = scmp.eq.s32.totalorder %s14, 0
      %p98 = por %p96, %p97
      %p99 = scmp.ne.s32.totalorder %s88, %s91
      %p100 = scmp.eq.s32.totalorder %s19, 1
      %p101 = por %p99, %p100
      %p102 = scmp.ne.s32.totalorder %s91, %s92
      %p103 = scmp.eq.s32.totalorder %s19, 0
      %p104 = por %p102, %p103
      %p105 = scmp.ne.s32.totalorder %s91, %s92
      %p106 = scmp.eq.s32.totalorder %s20, 1
      %p107 = por %p105, %p106
      %p109 = scmp.ne.s32.totalorder %s92, %s108
      %p110 = scmp.eq.s32.totalorder %s20, 0
      %p111 = por %p109, %p110
      %s112 = ssub.s32 %s21, %s33
      %s113 = ssub.s32 %s22, %s29
      %s114 = sor.u32 %s112, %s113
      %p115 = scmp.eq.s32.totalorder %s114, 0
      %s117 = sadd.s32 %s116, 1
      %s118 = scalar_select %p115, %s116, %s117
      %p121 = pneg %p115
      %p122 = scmp.eq.s32.totalorder %s14, 1
      %p123 = por %p121, %p122
      %p124 = scmp.ne.s32.totalorder %s116, %s119
      %p125 = scmp.eq.s32.totalorder %s14, 0
      %p126 = por %p124, %p125
      %p127 = scmp.ne.s32.totalorder %s116, %s119
      %p128 = scmp.eq.s32.totalorder %s19, 1
      %p129 = por %p127, %p128
      %p130 = scmp.ne.s32.totalorder %s119, %s120
      %p131 = scmp.eq.s32.totalorder %s19, 0
      %p132 = por %p130, %p131
      %p133 = scmp.ne.s32.totalorder %s119, %s120
      %p134 = scmp.eq.s32.totalorder %s20, 1
      %p135 = por %p133, %p134
      %p137 = scmp.ne.s32.totalorder %s120, %s136
      %p138 = scmp.eq.s32.totalorder %s20, 0
      %p139 = por %p137, %p138
      %s140 = ssub.s32 %s21, %s33
      %p141 = scmp.eq.s32.totalorder %s140, 0
      %s143 = sadd.s32 %s142, 1
      %s144 = scalar_select %p141, %s142, %s143
      %p147 = pneg %p141
      %p148 = scmp.eq.s32.totalorder %s14, 1
      %p149 = por %p147, %p148
      %p150 = scmp.ne.s32.totalorder %s142, %s145
      %p151 = scmp.eq.s32.totalorder %s14, 0
      %p152 = por %p150, %p151
      %p153 = scmp.ne.s32.totalorder %s142, %s145
      %p154 = scmp.eq.s32.totalorder %s19, 1
      %p155 = por %p153, %p154
      %p156 = scmp.ne.s32.totalorder %s145, %s146
      %p157 = scmp.eq.s32.totalorder %s19, 0
      %p158 = por %p156, %p157
      %p159 = scmp.ne.s32.totalorder %s145, %s146
      %p160 = scmp.eq.s32.totalorder %s20, 1
      %p161 = por %p159, %p160
      %p163 = scmp.ne.s32.totalorder %s146, %s162
      %p164 = scmp.eq.s32.totalorder %s20, 0
      %p165 = por %p163, %p164
      %p166 = scmp.le.s32.totalorder 1, %s14
      %p167 = scmp.lt.s32.totalorder %s14, 3
      %p168 = pnand %p166, %p167
      %p169 = pneg %p168
      // Predicated region
      $region9: #{tpu_custom_call.1} parent=5 // pred_check
        _
      $region10: #{tpu_custom_call.1} parent=5 // pred_check_branch
        %171 = sbr.rel (%p168) target = $region12
      $region11: #{tpu_custom_call.1} parent=5 // pred_region
        %s172 = ssub.s32 %s14, 1
      $region12: #{tpu_custom_call.1} parent=5 // pred_fallthru
        _
      %p173 = scmp.lt.s32.totalorder %s14, 2
      // Predicated region
      $region13: #{tpu_custom_call.1} parent=5 // pred_check
        %p174 = pneg %p173
      $region14: #{tpu_custom_call.1} parent=5 // pred_check_branch
        %176 = sbr.rel (%p174) target = $region16
      $region15: #{tpu_custom_call.1} parent=5 // pred_region
        // Predicated region
        $region17: #{tpu_custom_call.1} parent=15 // pred_check
          %p177 = pneg %p46
        $region18: #{tpu_custom_call.1} parent=15 // pred_check_branch
          %179 = sbr.rel (%p177) target = $region20
        $region19: #{tpu_custom_call.1} parent=15 // pred_region
          %p180 = scmp.lt.s32.totalorder %s21, 1
          %s181 = scalar_select %p180, %s21, 1
          %s182 = smul.addr %s181, 2
          %s183 = smul.addr %s182, 8
          %s184 = scalar_lea.vmem %s0, %s183
        $region20: #{tpu_custom_call.1} parent=15 // pred_fallthru
          _
        // Predicated region
        $region21: #{tpu_custom_call.1} parent=15 // pred_check
          %p185 = pneg %p72
        $region22: #{tpu_custom_call.1} parent=15 // pred_check_branch
          %187 = sbr.rel (%p185) target = $region24
        $region23: #{tpu_custom_call.1} parent=15 // pred_region
          %p188 = scmp.lt.s32.totalorder %s21, 1
          %s189 = scalar_select %p188, %s21, 1
          %s190 = smul.addr %s189, 2
          %s191 = smul.addr %s190, 4
          %s192 = scalar_lea.vmem %s1, %s191
        $region24: #{tpu_custom_call.1} parent=15 // pred_fallthru
          _
        // Predicated region
        $region25: #{tpu_custom_call.1} parent=15 // pred_check
          %p193 = pneg %p98
        $region26: #{tpu_custom_call.1} parent=15 // pred_check_branch
          %195 = sbr.rel (%p193) target = $region28
        $region27: #{tpu_custom_call.1} parent=15 // pred_region
          %p196 = scmp.lt.s32.totalorder %s21, 1
          %s197 = scalar_select %p196, %s21, 1
          %s198 = smul.addr %s197, 32
          %s199 = smul.addr %s198, 8
          %s200 = scalar_lea.vmem %s2, %s199
        $region28: #{tpu_custom_call.1} parent=15 // pred_fallthru
          _
      $region16: #{tpu_custom_call.1} parent=5 // pred_fallthru
        _
      %p201 = scmp.le.s32.totalorder 1, %s14
      %p202 = scmp.lt.s32.totalorder %s14, 3
      %p203 = pnand %p201, %p202
      %p204 = pneg %p203
      // Predicated region
      $region29: #{tpu_custom_call.1} parent=5 // pred_check
        _
      $region30: #{tpu_custom_call.1} parent=5 // pred_check_branch
        %206 = sbr.rel (%p203) target = $region32
      $region31: #{tpu_custom_call.1} parent=5 // pred_region
        %s207 = ssub.s32 %s14, 1
        %p208 = scmp.lt.s32.totalorder %s23, 1
        %s209 = scalar_select %p208, %s23, 1
        %s210 = smul.addr %s209, 2
        %s211 = smul.addr %s210, 8
        %s212 = scalar_lea.vmem %s0, %s211
        %p213 = pneg %p52
        %p214 = pneg %p49
        %p215 = scmp.lt.s32.totalorder %s23, 1
        %s216 = scalar_select %p215, %s23, 1
        %s217 = smul.addr %s216, 2
        %s218 = smul.addr %s217, 4
        %s219 = scalar_lea.vmem %s1, %s218
        %p220 = pneg %p78
        %p221 = pneg %p75
        %p222 = scmp.lt.s32.totalorder %s23, 1
        %s223 = scalar_select %p222, %s23, 1
        %s224 = smul.addr %s223, 32
        %s225 = smul.addr %s224, 8
        %s226 = scalar_lea.vmem %s2, %s225
        %p227 = pneg %p104
        %p228 = pneg %p101
        %p229 = pneg %p132
        %p230 = pneg %p129
        %s231 = sand.u32 %s119, 1
        %s232 = scalar_lea.sflag [#allocation4], %s231
        %s233 = sand.u32 %s119, 1
        %s234 = smul.addr %s233, 8
        %s235 = scalar_lea.vmem [#allocation3], %s234
        %p236 = pneg %p158
        %p237 = pneg %p155
        %p238 = scmp.lt.s32.totalorder %s23, 1
        %s239 = scalar_select %p238, %s23, 1
        %s240 = smul.addr %s239, 2
        %s241 = smul.addr %s240, 4
        %s242 = scalar_lea.vmem %s4, %s241
        %p243 = scmp.lt.s32.totalorder %s23, 1
        %s244 = scalar_select %p243, %s23, 1
        %s245 = smul.addr %s244, 2
        %s246 = smul.addr %s245, 8
        %s247 = scalar_lea.vmem %s0, %s246
        %p248 = scmp.lt.s32.totalorder %s23, 1
        %s249 = scalar_select %p248, %s23, 1
        %s250 = smul.addr %s249, 2
        %s251 = smul.addr %s250, 4
        %s252 = scalar_lea.vmem %s1, %s251
        %p253 = scmp.lt.s32.totalorder %s23, 1
        %s254 = scalar_select %p253, %s23, 1
        %s255 = smul.addr %s254, 32
        %s256 = smul.addr %s255, 8
        %s257 = scalar_lea.vmem %s2, %s256
        %p258 = scmp.lt.s32.totalorder %s23, 1
        %s259 = scalar_select %p258, %s23, 1
        %s260 = smul.addr %s259, 2
        %s261 = smul.addr %s260, 4
        %s262 = scalar_lea.vmem %s4, %s261
        %p263 = scmp.eq.s32.totalorder %s24, 0
        // Predicated region
        $region33: #{tpu_custom_call.1} parent=31 // pred_check
          %p264 = pneg %p263
        $region34: #{tpu_custom_call.1} parent=31 // pred_check_branch
          %266 = sbr.rel (%p264) target = $region36
        $region35: #{tpu_custom_call.1} parent=31 // pred_region
          %v267 = vld [vmem:[%s252] sm:$0x77]
          %v268 = vlaneseq
          %v269 = vand.u32 %v268, 127
          %v270 = vadd.s32 %v269, 128
          %vm271 = vcmp.lt.s32.totalorder %v269, 200
          %vm272 = vcmp.lt.s32.totalorder %v270, 200
          %v273 = vsel %vm271, 1, 0
          %v274 = vsel %vm272, 1, 0
          %v275 = vcvt.s32.f32 %v273
          %v276 = vcvt.s32.f32 %v274
          %v279 = vcombine.low %v275, %v276
          %v281 = vmul.f32 %v267, %v279
          %v283 = vcombine.high %v281, %v281
          %vm285 = vcmask 1042432
          %v286 = vsel %vm285, %v281, 0.0
          %v287 = vsel %vm285, %v283, 0.0
          %v288 = vadd.f32 %v286, %v287
          %289 = vadd.xlane.f32.xlu0 %v288
          %v290 = vpop.xlane.xlu0 %289
          %v291 = vmul.f32 %v290, 0.005
          %v294 = vunpack.c.l.s4 839922192
          %v295 = vunpack.c.0.s8 %v294
          %v296 = vlaneseq
          %v297 = vshrl.u32 %v296, 7
          %v298 = vsub.s32 %v295, %v297
          %v299 = vrot.slane %v291, %v298
          %v301 = vsub.f32 %v267, %v299
          %v302 = vmul.f32 %v301, %v301
          %v303 = vmul.f32 %v302, %v279
          %v305 = vcombine.high %v303, %v303
          %v307 = vsel %vm285, %v303, 0.0
          %v308 = vsel %vm285, %v305, 0.0
          %v309 = vadd.f32 %v307, %v308
          %310 = vadd.xlane.f32.xlu0 %v309
          %v311 = vpop.xlane.xlu0 %310
          %v312 = vrsqrt.pop %v311
          %v313 = vmul.f32 %v311, %v312
          %vm314 = vcmp.eq.f32.partialorder %v311, inf
          %v315 = vsel %vm314, %v311, %v313
          %vm316 = vcmp.eq.f32.partialorder %v311, 0.0
          %v317 = vand.u32 %v311, 2147483648
          %v318 = vsel %vm316, %v317, %v315
          %v320 = vrot.slane %v318, 1
          %v322 = vmax.f32 %v318, %v320
          %v323 = vrot.slane %v318, 2
          %v325 = vmax.f32 %v322, %v323
          %v326 = vmul.f32 %v325, 2.0
          %v327 = vadd.f32 %v326, 0.0
          %s329 = vtos %v327
          %v330 = vstv %s329
          %v332 = vrcp.pop %v330
          %v333 = vmul.f32 %v301, %v332
          %v334 = vadd.f32 %v333, 0.5
          %v335 = vmul.f32 %v334, 4.0
          %v336 = vmax.f32 %v335, 0.0
          %v337 = vmin.f32 %v336, 3.0
          %v338 = vmul.f32 %v334, 3.0
          %v339 = vmax.f32 %v338, 0.0
          %v340 = vmin.f32 %v339, 2.0
          %v342 = vlaneseq
          %v343 = vshrl.u32 %v342, 7
          %v344 = vsub.s32 0, %v343
          %v345 = vrot.slane %v337, %v344
          %v346 = vlaneseq
          %v347 = vshrl.u32 %v346, 7
          %v348 = vsub.s32 4, %v347
          %v349 = vrot.slane %v337, %v348
          %v352 = vlaneseq
          %v353 = vshrl.u32 %v352, 7
          %v354 = vsub.s32 1, %v353
          %v355 = vrot.slane %v337, %v354
          %v356 = vlaneseq
          %v357 = vshrl.u32 %v356, 7
          %v358 = vsub.s32 5, %v357
          %v359 = vrot.slane %v337, %v358
          %v363 = vlaneseq
          %v364 = vshrl.u32 %v363, 7
          %v365 = vsub.s32 2, %v364
          %v366 = vrot.slane %v340, %v365
          %v367 = vlaneseq
          %v368 = vshrl.u32 %v367, 7
          %v369 = vsub.s32 6, %v368
          %v370 = vrot.slane %v340, %v369
          %vm373 = vcmask 1040384
          %v374 = vsel %vm373, %v345, %v355
          %v375 = vsel %vm373, %v349, %v359
          %vm376 = vcmask 1041408
          %v377 = vsel %vm376, %v374, %v366
          %v378 = vsel %vm376, %v375, %v370
          %v381 = vcombine.low %v377, %v378
          %383 = vst [vmem:[%s262] sm:$0x77] %v381
          %v384 = vld [vmem:[%s257] sm:$0xff]
          %v385 = vld [vmem:[%s257 + $0x8] sm:$0xff]
          %v386 = vld [vmem:[%s257 + $0x10] sm:$0xff]
          %v387 = vld [vmem:[%s257 + $0x18] sm:$0xff]
          %v388 = vld [vmem:[%s257 + $0x20] sm:$0xff]
          %v389 = vld [vmem:[%s257 + $0x28] sm:$0xff]
          %v390 = vld [vmem:[%s257 + $0x30] sm:$0xff]
          %v391 = vld [vmem:[%s257 + $0x38] sm:$0xff]
          %v392 = vld [vmem:[%s257 + $0x40] sm:$0xff]
          %v393 = vld [vmem:[%s257 + $0x48] sm:$0xff]
          %v394 = vld [vmem:[%s257 + $0x50] sm:$0xff]
          %v395 = vld [vmem:[%s257 + $0x58] sm:$0xff]
          %v396 = vld [vmem:[%s257 + $0x60] sm:$0xff]
          %v397 = vld [vmem:[%s257 + $0x68] sm:$0xff]
          %v398 = vld [vmem:[%s257 + $0x70] sm:$0xff]
          %v399 = vld [vmem:[%s257 + $0x78] sm:$0xff]
          %v400 = vld [vmem:[%s257 + $0x80] sm:$0xff]
          %v401 = vld [vmem:[%s257 + $0x88] sm:$0xff]
          %v402 = vld [vmem:[%s257 + $0x90] sm:$0xff]
          %v403 = vld [vmem:[%s257 + $0x98] sm:$0xff]
          %v404 = vld [vmem:[%s257 + $0xa0] sm:$0xff]
          %v405 = vld [vmem:[%s257 + $0xa8] sm:$0xff]
          %v406 = vld [vmem:[%s257 + $0xb0] sm:$0xff]
          %v407 = vld [vmem:[%s257 + $0xb8] sm:$0xff]
          %v408 = vld [vmem:[%s257 + $0xc0] sm:$0xff]
          %v409 = vld [vmem:[%s257 + $0xc8] sm:$0xff]
          %v410 = vld [vmem:[%s257 + $0xd0] sm:$0xff]
          %v411 = vld [vmem:[%s257 + $0xd8] sm:$0xff]
          %v412 = vld [vmem:[%s257 + $0xe0] sm:$0xff]
          %v413 = vld [vmem:[%s257 + $0xe8] sm:$0xff]
          %v414 = vld [vmem:[%s257 + $0xf0] sm:$0xff]
          %v415 = vld [vmem:[%s257 + $0xf8] sm:$0xff]
          %v416 = vlaneseq
          %v417 = vshrl.u32 %v416, 7
          %v418 = vsub.s32 0, %v417
          %v419 = vrot.slane %v291, %v418
          %v420 = vsub.f32 %v384, %v419
          %v421 = vsub.f32 %v385, %v419
          %v422 = vsub.f32 %v386, %v419
          %v423 = vsub.f32 %v387, %v419
          %v424 = vsub.f32 %v388, %v419
          %v425 = vsub.f32 %v389, %v419
          %v426 = vsub.f32 %v390, %v419
          %v427 = vsub.f32 %v391, %v419
          %v428 = vsub.f32 %v392, %v419
          %v429 = vsub.f32 %v393, %v419
          %v430 = vsub.f32 %v394, %v419
          %v431 = vsub.f32 %v395, %v419
          %v432 = vsub.f32 %v396, %v419
          %v433 = vsub.f32 %v397, %v419
          %v434 = vsub.f32 %v398, %v419
          %v435 = vsub.f32 %v399, %v419
          %v436 = vsub.f32 %v400, %v419
          %v437 = vsub.f32 %v401, %v419
          %v438 = vsub.f32 %v402, %v419
          %v439 = vsub.f32 %v403, %v419
          %v440 = vsub.f32 %v404, %v419
          %v441 = vsub.f32 %v405, %v419
          %v442 = vsub.f32 %v406, %v419
          %v443 = vsub.f32 %v407, %v419
          %v444 = vsub.f32 %v408, %v419
          %v445 = vsub.f32 %v409, %v419
          %v446 = vsub.f32 %v410, %v419
          %v447 = vsub.f32 %v411, %v419
          %v448 = vsub.f32 %v412, %v419
          %v449 = vsub.f32 %v413, %v419
          %v450 = vsub.f32 %v414, %v419
          %v451 = vsub.f32 %v415, %v419
          %v452 = vlaneseq
          %v453 = vshrl.u32 %v452, 7
          %v454 = vsub.s32 0, %v453
          %v455 = vrot.slane %v327, %v454
          %v456 = vrcp.pop %v455
          %v457 = vmul.f32 %v420, %v456
          %v458 = vmul.f32 %v421, %v456
          %v459 = vmul.f32 %v422, %v456
          %v460 = vmul.f32 %v423, %v456
          %v461 = vmul.f32 %v424, %v456
          %v462 = vmul.f32 %v425, %v456
          %v463 = vmul.f32 %v426, %v456
          %v464 = vmul.f32 %v427, %v456
          %v465 = vmul.f32 %v428, %v456
          %v466 = vmul.f32 %v429, %v456
          %v467 = vmul.f32 %v430, %v456
          %v468 = vmul.f32 %v431, %v456
          %v469 = vmul.f32 %v432, %v456
          %v470 = vmul.f32 %v433, %v456
          %v471 = vmul.f32 %v434, %v456
          %v472 = vmul.f32 %v435, %v456
          %v473 = vmul.f32 %v436, %v456
          %v474 = vmul.f32 %v437, %v456
          %v475 = vmul.f32 %v438, %v456
          %v476 = vmul.f32 %v439, %v456
          %v477 = vmul.f32 %v440, %v456
          %v478 = vmul.f32 %v441, %v456
          %v479 = vmul.f32 %v442, %v456
          %v480 = vmul.f32 %v443, %v456
          %v481 = vmul.f32 %v444, %v456
          %v482 = vmul.f32 %v445, %v456
          %v483 = vmul.f32 %v446, %v456
          %v484 = vmul.f32 %v447, %v456
          %v485 = vmul.f32 %v448, %v456
          %v486 = vmul.f32 %v449, %v456
          %v487 = vmul.f32 %v450, %v456
          %v488 = vmul.f32 %v451, %v456
          %v489 = vadd.f32 %v457, 0.5
          %v490 = vadd.f32 %v458, 0.5
          %v491 = vadd.f32 %v459, 0.5
          %v492 = vadd.f32 %v460, 0.5
          %v493 = vadd.f32 %v461, 0.5
          %v494 = vadd.f32 %v462, 0.5
          %v495 = vadd.f32 %v463, 0.5
          %v496 = vadd.f32 %v464, 0.5
          %v497 = vadd.f32 %v465, 0.5
          %v498 = vadd.f32 %v466, 0.5
          %v499 = vadd.f32 %v467, 0.5
          %v500 = vadd.f32 %v468, 0.5
          %v501 = vadd.f32 %v469, 0.5
          %v502 = vadd.f32 %v470, 0.5
          %v503 = vadd.f32 %v471, 0.5
          %v504 = vadd.f32 %v472, 0.5
          %v505 = vadd.f32 %v473, 0.5
          %v506 = vadd.f32 %v474, 0.5
          %v507 = vadd.f32 %v475, 0.5
          %v508 = vadd.f32 %v476, 0.5
          %v509 = vadd.f32 %v477, 0.5
          %v510 = vadd.f32 %v478, 0.5
          %v511 = vadd.f32 %v479, 0.5
          %v512 = vadd.f32 %v480, 0.5
          %v513 = vadd.f32 %v481, 0.5
          %v514 = vadd.f32 %v482, 0.5
          %v515 = vadd.f32 %v483, 0.5
          %v516 = vadd.f32 %v484, 0.5
          %v517 = vadd.f32 %v485, 0.5
          %v518 = vadd.f32 %v486, 0.5
          %v519 = vadd.f32 %v487, 0.5
          %v520 = vadd.f32 %v488, 0.5
          %v521 = vmul.f32 %v489, 4.0
          %v522 = vmul.f32 %v490, 4.0
          %v523 = vmul.f32 %v491, 4.0
          %v524 = vmul.f32 %v492, 4.0
          %v525 = vmul.f32 %v493, 4.0
          %v526 = vmul.f32 %v494, 4.0
          %v527 = vmul.f32 %v495, 4.0
          %v528 = vmul.f32 %v496, 4.0
          %v529 = vmul.f32 %v497, 4.0
          %v530 = vmul.f32 %v498, 4.0
          %v531 = vmul.f32 %v499, 4.0
          %v532 = vmul.f32 %v500, 4.0
          %v533 = vmul.f32 %v501, 4.0
          %v534 = vmul.f32 %v502, 4.0
          %v535 = vmul.f32 %v503, 4.0
          %v536 = vmul.f32 %v504, 4.0
          %v537 = vmul.f32 %v505, 4.0
          %v538 = vmul.f32 %v506, 4.0
          %v539 = vmul.f32 %v507, 4.0
          %v540 = vmul.f32 %v508, 4.0
          %v541 = vmul.f32 %v509, 4.0
          %v542 = vmul.f32 %v510, 4.0
          %v543 = vmul.f32 %v511, 4.0
          %v544 = vmul.f32 %v512, 4.0
          %v545 = vmul.f32 %v513, 4.0
          %v546 = vmul.f32 %v514, 4.0
          %v547 = vmul.f32 %v515, 4.0
          %v548 = vmul.f32 %v516, 4.0
          %v549 = vmul.f32 %v517, 4.0
          %v550 = vmul.f32 %v518, 4.0
          %v551 = vmul.f32 %v519, 4.0
          %v552 = vmul.f32 %v520, 4.0
          %v553 = vmax.f32 %v521, 0.0
          %v554 = vmax.f32 %v522, 0.0
          %v555 = vmax.f32 %v523, 0.0
          %v556 = vmax.f32 %v524, 0.0
          %v557 = vmax.f32 %v525, 0.0
          %v558 = vmax.f32 %v526, 0.0
          %v559 = vmax.f32 %v527, 0.0
          %v560 = vmax.f32 %v528, 0.0
          %v561 = vmax.f32 %v529, 0.0
          %v562 = vmax.f32 %v530, 0.0
          %v563 = vmax.f32 %v531, 0.0
          %v564 = vmax.f32 %v532, 0.0
          %v565 = vmax.f32 %v533, 0.0
          %v566 = vmax.f32 %v534, 0.0
          %v567 = vmax.f32 %v535, 0.0
          %v568 = vmax.f32 %v536, 0.0
          %v569 = vmax.f32 %v537, 0.0
          %v570 = vmax.f32 %v538, 0.0
          %v571 = vmax.f32 %v539, 0.0
          %v572 = vmax.f32 %v540, 0.0
          %v573 = vmax.f32 %v541, 0.0
          %v574 = vmax.f32 %v542, 0.0
          %v575 = vmax.f32 %v543, 0.0
          %v576 = vmax.f32 %v544, 0.0
          %v577 = vmax.f32 %v545, 0.0
          %v578 = vmax.f32 %v546, 0.0
          %v579 = vmax.f32 %v547, 0.0
          %v580 = vmax.f32 %v548, 0.0
          %v581 = vmax.f32 %v549, 0.0
          %v582 = vmax.f32 %v550, 0.0
          %v583 = vmax.f32 %v551, 0.0
          %v584 = vmax.f32 %v552, 0.0
          %v585 = vmin.f32 %v553, 3.0
          %v586 = vmin.f32 %v554, 3.0
          %v587 = vmin.f32 %v555, 3.0
          %v588 = vmin.f32 %v556, 3.0
          %v589 = vmin.f32 %v557, 3.0
          %v590 = vmin.f32 %v558, 3.0
          %v591 = vmin.f32 %v559, 3.0
          %v592 = vmin.f32 %v560, 3.0
          %v593 = vmin.f32 %v561, 3.0
          %v594 = vmin.f32 %v562, 3.0
          %v595 = vmin.f32 %v563, 3.0
          %v596 = vmin.f32 %v564, 3.0
          %v597 = vmin.f32 %v565, 3.0
          %v598 = vmin.f32 %v566, 3.0
          %v599 = vmin.f32 %v567, 3.0
          %v600 = vmin.f32 %v568, 3.0
          %v601 = vmin.f32 %v569, 3.0
          %v602 = vmin.f32 %v570, 3.0
          %v603 = vmin.f32 %v571, 3.0
          %v604 = vmin.f32 %v572, 3.0
          %v605 = vmin.f32 %v573, 3.0
          %v606 = vmin.f32 %v574, 3.0
          %v607 = vmin.f32 %v575, 3.0
          %v608 = vmin.f32 %v576, 3.0
          %v609 = vmin.f32 %v577, 3.0
          %v610 = vmin.f32 %v578, 3.0
          %v611 = vmin.f32 %v579, 3.0
          %v612 = vmin.f32 %v580, 3.0
          %v613 = vmin.f32 %v581, 3.0
          %v614 = vmin.f32 %v582, 3.0
          %v615 = vmin.f32 %v583, 3.0
          %v616 = vmin.f32 %v584, 3.0
          %v617 = vround.ne.pseudo %v585
          %v618 = vround.ne.pseudo %v586
          %v619 = vround.ne.pseudo %v587
          %v620 = vround.ne.pseudo %v588
          %v621 = vround.ne.pseudo %v589
          %v622 = vround.ne.pseudo %v590
          %v623 = vround.ne.pseudo %v591
          %v624 = vround.ne.pseudo %v592
          %v625 = vround.ne.pseudo %v593
          %v626 = vround.ne.pseudo %v594
          %v627 = vround.ne.pseudo %v595
          %v628 = vround.ne.pseudo %v596
          %v629 = vround.ne.pseudo %v597
          %v630 = vround.ne.pseudo %v598
          %v631 = vround.ne.pseudo %v599
          %v632 = vround.ne.pseudo %v600
          %v633 = vround.ne.pseudo %v601
          %v634 = vround.ne.pseudo %v602
          %v635 = vround.ne.pseudo %v603
          %v636 = vround.ne.pseudo %v604
          %v637 = vround.ne.pseudo %v605
          %v638 = vround.ne.pseudo %v606
          %v639 = vround.ne.pseudo %v607
          %v640 = vround.ne.pseudo %v608
          %v641 = vround.ne.pseudo %v609
          %v642 = vround.ne.pseudo %v610
          %v643 = vround.ne.pseudo %v611
          %v644 = vround.ne.pseudo %v612
          %v645 = vround.ne.pseudo %v613
          %v646 = vround.ne.pseudo %v614
          %v647 = vround.ne.pseudo %v615
          %v648 = vround.ne.pseudo %v616
          %v649 = vlaneseq
          %v650 = vshrl.u32 %v649, 7
          %v651 = vsub.s32 1, %v650
          %v652 = vrot.slane %v291, %v651
          %v653 = vsub.f32 %v384, %v652
          %v654 = vsub.f32 %v385, %v652
          %v655 = vsub.f32 %v386, %v652
          %v656 = vsub.f32 %v387, %v652
          %v657 = vsub.f32 %v388, %v652
          %v658 = vsub.f32 %v389, %v652
          %v659 = vsub.f32 %v390, %v652
          %v660 = vsub.f32 %v391, %v652
          %v661 = vsub.f32 %v392, %v652
          %v662 = vsub.f32 %v393, %v652
          %v663 = vsub.f32 %v394, %v652
          %v664 = vsub.f32 %v395, %v652
          %v665 = vsub.f32 %v396, %v652
          %v666 = vsub.f32 %v397, %v652
          %v667 = vsub.f32 %v398, %v652
          %v668 = vsub.f32 %v399, %v652
          %v669 = vsub.f32 %v400, %v652
          %v670 = vsub.f32 %v401, %v652
          %v671 = vsub.f32 %v402, %v652
          %v672 = vsub.f32 %v403, %v652
          %v673 = vsub.f32 %v404, %v652
          %v674 = vsub.f32 %v405, %v652
          %v675 = vsub.f32 %v406, %v652
          %v676 = vsub.f32 %v407, %v652
          %v677 = vsub.f32 %v408, %v652
          %v678 = vsub.f32 %v409, %v652
          %v679 = vsub.f32 %v410, %v652
          %v680 = vsub.f32 %v411, %v652
          %v681 = vsub.f32 %v412, %v652
          %v682 = vsub.f32 %v413, %v652
          %v683 = vsub.f32 %v414, %v652
          %v684 = vsub.f32 %v415, %v652
          %686 = vrot.lane.b32.xlu0 %v455, 1
          %v687 = vpop.permute.xlu0 %686
          %v689 = vrcp.pop %v687
          %v690 = vmul.f32 %v653, %v689
          %v691 = vmul.f32 %v654, %v689
          %v692 = vmul.f32 %v655, %v689
          %v693 = vmul.f32 %v656, %v689
          %v694 = vmul.f32 %v657, %v689
          %v695 = vmul.f32 %v658, %v689
          %v696 = vmul.f32 %v659, %v689
          %v697 = vmul.f32 %v660, %v689
          %v698 = vmul.f32 %v661, %v689
          %v699 = vmul.f32 %v662, %v689
          %v700 = vmul.f32 %v663, %v689
          %v701 = vmul.f32 %v664, %v689
          %v702 = vmul.f32 %v665, %v689
          %v703 = vmul.f32 %v666, %v689
          %v704 = vmul.f32 %v667, %v689
          %v705 = vmul.f32 %v668, %v689
          %v706 = vmul.f32 %v669, %v689
          %v707 = vmul.f32 %v670, %v689
          %v708 = vmul.f32 %v671, %v689
          %v709 = vmul.f32 %v672, %v689
          %v710 = vmul.f32 %v673, %v689
          %v711 = vmul.f32 %v674, %v689
          %v712 = vmul.f32 %v675, %v689
          %v713 = vmul.f32 %v676, %v689
          %v714 = vmul.f32 %v677, %v689
          %v715 = vmul.f32 %v678, %v689
          %v716 = vmul.f32 %v679, %v689
          %v717 = vmul.f32 %v680, %v689
          %v718 = vmul.f32 %v681, %v689
          %v719 = vmul.f32 %v682, %v689
          %v720 = vmul.f32 %v683, %v689
          %v721 = vmul.f32 %v684, %v689
          %v722 = vadd.f32 %v690, 0.5
          %v723 = vadd.f32 %v691, 0.5
          %v724 = vadd.f32 %v692, 0.5
          %v725 = vadd.f32 %v693, 0.5
          %v726 = vadd.f32 %v694, 0.5
          %v727 = vadd.f32 %v695, 0.5
          %v728 = vadd.f32 %v696, 0.5
          %v729 = vadd.f32 %v697, 0.5
          %v730 = vadd.f32 %v698, 0.5
          %v731 = vadd.f32 %v699, 0.5
          %v732 = vadd.f32 %v700, 0.5
          %v733 = vadd.f32 %v701, 0.5
          %v734 = vadd.f32 %v702, 0.5
          %v735 = vadd.f32 %v703, 0.5
          %v736 = vadd.f32 %v704, 0.5
          %v737 = vadd.f32 %v705, 0.5
          %v738 = vadd.f32 %v706, 0.5
          %v739 = vadd.f32 %v707, 0.5
          %v740 = vadd.f32 %v708, 0.5
          %v741 = vadd.f32 %v709, 0.5
          %v742 = vadd.f32 %v710, 0.5
          %v743 = vadd.f32 %v711, 0.5
          %v744 = vadd.f32 %v712, 0.5
          %v745 = vadd.f32 %v713, 0.5
          %v746 = vadd.f32 %v714, 0.5
          %v747 = vadd.f32 %v715, 0.5
          %v748 = vadd.f32 %v716, 0.5
          %v749 = vadd.f32 %v717, 0.5
          %v750 = vadd.f32 %v718, 0.5
          %v751 = vadd.f32 %v719, 0.5
          %v752 = vadd.f32 %v720, 0.5
          %v753 = vadd.f32 %v721, 0.5
          %v754 = vmul.f32 %v722, 4.0
          %v755 = vmul.f32 %v723, 4.0
          %v756 = vmul.f32 %v724, 4.0
          %v757 = vmul.f32 %v725, 4.0
          %v758 = vmul.f32 %v726, 4.0
          %v759 = vmul.f32 %v727, 4.0
          %v760 = vmul.f32 %v728, 4.0
          %v761 = vmul.f32 %v729, 4.0
          %v762 = vmul.f32 %v730, 4.0
          %v763 = vmul.f32 %v731, 4.0
          %v764 = vmul.f32 %v732, 4.0
          %v765 = vmul.f32 %v733, 4.0
          %v766 = vmul.f32 %v734, 4.0
          %v767 = vmul.f32 %v735, 4.0
          %v768 = vmul.f32 %v736, 4.0
          %v769 = vmul.f32 %v737, 4.0
          %v770 = vmul.f32 %v738, 4.0
          %v771 = vmul.f32 %v739, 4.0
          %v772 = vmul.f32 %v740, 4.0
          %v773 = vmul.f32 %v741, 4.0
          %v774 = vmul.f32 %v742, 4.0
          %v775 = vmul.f32 %v743, 4.0
          %v776 = vmul.f32 %v744, 4.0
          %v777 = vmul.f32 %v745, 4.0
          %v778 = vmul.f32 %v746, 4.0
          %v779 = vmul.f32 %v747, 4.0
          %v780 = vmul.f32 %v748, 4.0
          %v781 = vmul.f32 %v749, 4.0
          %v782 = vmul.f32 %v750, 4.0
          %v783 = vmul.f32 %v751, 4.0
          %v784 = vmul.f32 %v752, 4.0
          %v785 = vmul.f32 %v753, 4.0
          %v786 = vmax.f32 %v754, 0.0
          %v787 = vmax.f32 %v755, 0.0
          %v788 = vmax.f32 %v756, 0.0
          %v789 = vmax.f32 %v757, 0.0
          %v790 = vmax.f32 %v758, 0.0
          %v791 = vmax.f32 %v759, 0.0
          %v792 = vmax.f32 %v760, 0.0
          %v793 = vmax.f32 %v761, 0.0
          %v794 = vmax.f32 %v762, 0.0
          %v795 = vmax.f32 %v763, 0.0
          %v796 = vmax.f32 %v764, 0.0
          %v797 = vmax.f32 %v765, 0.0
          %v798 = vmax.f32 %v766, 0.0
          %v799 = vmax.f32 %v767, 0.0
          %v800 = vmax.f32 %v768, 0.0
          %v801 = vmax.f32 %v769, 0.0
          %v802 = vmax.f32 %v770, 0.0
          %v803 = vmax.f32 %v771, 0.0
          %v804 = vmax.f32 %v772, 0.0
          %v805 = vmax.f32 %v773, 0.0
          %v806 = vmax.f32 %v774, 0.0
          %v807 = vmax.f32 %v775, 0.0
          %v808 = vmax.f32 %v776, 0.0
          %v809 = vmax.f32 %v777, 0.0
          %v810 = vmax.f32 %v778, 0.0
          %v811 = vmax.f32 %v779, 0.0
          %v812 = vmax.f32 %v780, 0.0
          %v813 = vmax.f32 %v781, 0.0
          %v814 = vmax.f32 %v782, 0.0
          %v815 = vmax.f32 %v783, 0.0
          %v816 = vmax.f32 %v784, 0.0
          %v817 = vmax.f32 %v785, 0.0
          %v818 = vmin.f32 %v786, 3.0
          %v819 = vmin.f32 %v787, 3.0
          %v820 = vmin.f32 %v788, 3.0
          %v821 = vmin.f32 %v789, 3.0
          %v822 = vmin.f32 %v790, 3.0
          %v823 = vmin.f32 %v791, 3.0
          %v824 = vmin.f32 %v792, 3.0
          %v825 = vmin.f32 %v793, 3.0
          %v826 = vmin.f32 %v794, 3.0
          %v827 = vmin.f32 %v795, 3.0
          %v828 = vmin.f32 %v796, 3.0
          %v829 = vmin.f32 %v797, 3.0
          %v830 = vmin.f32 %v798, 3.0
          %v831 = vmin.f32 %v799, 3.0
          %v832 = vmin.f32 %v800, 3.0
          %v833 = vmin.f32 %v801, 3.0
          %v834 = vmin.f32 %v802, 3.0
          %v835 = vmin.f32 %v803, 3.0
          %v836 = vmin.f32 %v804, 3.0
          %v837 = vmin.f32 %v805, 3.0
          %v838 = vmin.f32 %v806, 3.0
          %v839 = vmin.f32 %v807, 3.0
          %v840 = vmin.f32 %v808, 3.0
          %v841 = vmin.f32 %v809, 3.0
          %v842 = vmin.f32 %v810, 3.0
          %v843 = vmin.f32 %v811, 3.0
          %v844 = vmin.f32 %v812, 3.0
          %v845 = vmin.f32 %v813, 3.0
          %v846 = vmin.f32 %v814, 3.0
          %v847 = vmin.f32 %v815, 3.0
          %v848 = vmin.f32 %v816, 3.0
          %v849 = vmin.f32 %v817, 3.0
          %v850 = vround.ne.pseudo %v818
          %v851 = vround.ne.pseudo %v819
          %v852 = vround.ne.pseudo %v820
          %v853 = vround.ne.pseudo %v821
          %v854 = vround.ne.pseudo %v822
          %v855 = vround.ne.pseudo %v823
          %v856 = vround.ne.pseudo %v824
          %v857 = vround.ne.pseudo %v825
          %v858 = vround.ne.pseudo %v826
          %v859 = vround.ne.pseudo %v827
          %v860 = vround.ne.pseudo %v828
          %v861 = vround.ne.pseudo %v829
          %v862 = vround.ne.pseudo %v830
          %v863 = vround.ne.pseudo %v831
          %v864 = vround.ne.pseudo %v832
          %v865 = vround.ne.pseudo %v833
          %v866 = vround.ne.pseudo %v834
          %v867 = vround.ne.pseudo %v835
          %v868 = vround.ne.pseudo %v836
          %v869 = vround.ne.pseudo %v837
          %v870 = vround.ne.pseudo %v838
          %v871 = vround.ne.pseudo %v839
          %v872 = vround.ne.pseudo %v840
          %v873 = vround.ne.pseudo %v841
          %v874 = vround.ne.pseudo %v842
          %v875 = vround.ne.pseudo %v843
          %v876 = vround.ne.pseudo %v844
          %v877 = vround.ne.pseudo %v845
          %v878 = vround.ne.pseudo %v846
          %v879 = vround.ne.pseudo %v847
          %v880 = vround.ne.pseudo %v848
          %v881 = vround.ne.pseudo %v849
          %v882 = vlaneseq
          %v883 = vshrl.u32 %v882, 7
          %v884 = vsub.s32 2, %v883
          %v885 = vrot.slane %v291, %v884
          %v886 = vsub.f32 %v384, %v885
          %v887 = vsub.f32 %v385, %v885
          %v888 = vsub.f32 %v386, %v885
          %v889 = vsub.f32 %v387, %v885
          %v890 = vsub.f32 %v388, %v885
          %v891 = vsub.f32 %v389, %v885
          %v892 = vsub.f32 %v390, %v885
          %v893 = vsub.f32 %v391, %v885
          %v894 = vsub.f32 %v392, %v885
          %v895 = vsub.f32 %v393, %v885
          %v896 = vsub.f32 %v394, %v885
          %v897 = vsub.f32 %v395, %v885
          %v898 = vsub.f32 %v396, %v885
          %v899 = vsub.f32 %v397, %v885
          %v900 = vsub.f32 %v398, %v885
          %v901 = vsub.f32 %v399, %v885
          %v902 = vsub.f32 %v400, %v885
          %v903 = vsub.f32 %v401, %v885
          %v904 = vsub.f32 %v402, %v885
          %v905 = vsub.f32 %v403, %v885
          %v906 = vsub.f32 %v404, %v885
          %v907 = vsub.f32 %v405, %v885
          %v908 = vsub.f32 %v406, %v885
          %v909 = vsub.f32 %v407, %v885
          %v910 = vsub.f32 %v408, %v885
          %v911 = vsub.f32 %v409, %v885
          %v912 = vsub.f32 %v410, %v885
          %v913 = vsub.f32 %v411, %v885
          %v914 = vsub.f32 %v412, %v885
          %v915 = vsub.f32 %v413, %v885
          %v916 = vsub.f32 %v414, %v885
          %v917 = vsub.f32 %v415, %v885
          %918 = vrot.lane.b32.xlu0 %v455, 2
          %v919 = vpop.permute.xlu0 %918
          %v921 = vrcp.pop %v919
          %v922 = vmul.f32 %v886, %v921
          %v923 = vmul.f32 %v887, %v921
          %v924 = vmul.f32 %v888, %v921
          %v925 = vmul.f32 %v889, %v921
          %v926 = vmul.f32 %v890, %v921
          %v927 = vmul.f32 %v891, %v921
          %v928 = vmul.f32 %v892, %v921
          %v929 = vmul.f32 %v893, %v921
          %v930 = vmul.f32 %v894, %v921
          %v931 = vmul.f32 %v895, %v921
          %v932 = vmul.f32 %v896, %v921
          %v933 = vmul.f32 %v897, %v921
          %v934 = vmul.f32 %v898, %v921
          %v935 = vmul.f32 %v899, %v921
          %v936 = vmul.f32 %v900, %v921
          %v937 = vmul.f32 %v901, %v921
          %v938 = vmul.f32 %v902, %v921
          %v939 = vmul.f32 %v903, %v921
          %v940 = vmul.f32 %v904, %v921
          %v941 = vmul.f32 %v905, %v921
          %v942 = vmul.f32 %v906, %v921
          %v943 = vmul.f32 %v907, %v921
          %v944 = vmul.f32 %v908, %v921
          %v945 = vmul.f32 %v909, %v921
          %v946 = vmul.f32 %v910, %v921
          %v947 = vmul.f32 %v911, %v921
          %v948 = vmul.f32 %v912, %v921
          %v949 = vmul.f32 %v913, %v921
          %v950 = vmul.f32 %v914, %v921
          %v951 = vmul.f32 %v915, %v921
          %v952 = vmul.f32 %v916, %v921
          %v953 = vmul.f32 %v917, %v921
          %v954 = vadd.f32 %v922, 0.5
          %v955 = vadd.f32 %v923, 0.5
          %v956 = vadd.f32 %v924, 0.5
          %v957 = vadd.f32 %v925, 0.5
          %v958 = vadd.f32 %v926, 0.5
          %v959 = vadd.f32 %v927, 0.5
          %v960 = vadd.f32 %v928, 0.5
          %v961 = vadd.f32 %v929, 0.5
          %v962 = vadd.f32 %v930, 0.5
          %v963 = vadd.f32 %v931, 0.5
          %v964 = vadd.f32 %v932, 0.5
          %v965 = vadd.f32 %v933, 0.5
          %v966 = vadd.f32 %v934, 0.5
          %v967 = vadd.f32 %v935, 0.5
          %v968 = vadd.f32 %v936, 0.5
          %v969 = vadd.f32 %v937, 0.5
          %v970 = vadd.f32 %v938, 0.5
          %v971 = vadd.f32 %v939, 0.5
          %v972 = vadd.f32 %v940, 0.5
          %v973 = vadd.f32 %v941, 0.5
          %v974 = vadd.f32 %v942, 0.5
          %v975 = vadd.f32 %v943, 0.5
          %v976 = vadd.f32 %v944, 0.5
          %v977 = vadd.f32 %v945, 0.5
          %v978 = vadd.f32 %v946, 0.5
          %v979 = vadd.f32 %v947, 0.5
          %v980 = vadd.f32 %v948, 0.5
          %v981 = vadd.f32 %v949, 0.5
          %v982 = vadd.f32 %v950, 0.5
          %v983 = vadd.f32 %v951, 0.5
          %v984 = vadd.f32 %v952, 0.5
          %v985 = vadd.f32 %v953, 0.5
          %v986 = vmul.f32 %v954, 3.0
          %v987 = vmul.f32 %v955, 3.0
          %v988 = vmul.f32 %v956, 3.0
          %v989 = vmul.f32 %v957, 3.0
          %v990 = vmul.f32 %v958, 3.0
          %v991 = vmul.f32 %v959, 3.0
          %v992 = vmul.f32 %v960, 3.0
          %v993 = vmul.f32 %v961, 3.0
          %v994 = vmul.f32 %v962, 3.0
          %v995 = vmul.f32 %v963, 3.0
          %v996 = vmul.f32 %v964, 3.0
          %v997 = vmul.f32 %v965, 3.0
          %v998 = vmul.f32 %v966, 3.0
          %v999 = vmul.f32 %v967, 3.0
          %v1000 = vmul.f32 %v968, 3.0
          %v1001 = vmul.f32 %v969, 3.0
          %v1002 = vmul.f32 %v970, 3.0
          %v1003 = vmul.f32 %v971, 3.0
          %v1004 = vmul.f32 %v972, 3.0
          %v1005 = vmul.f32 %v973, 3.0
          %v1006 = vmul.f32 %v974, 3.0
          %v1007 = vmul.f32 %v975, 3.0
          %v1008 = vmul.f32 %v976, 3.0
          %v1009 = vmul.f32 %v977, 3.0
          %v1010 = vmul.f32 %v978, 3.0
          %v1011 = vmul.f32 %v979, 3.0
          %v1012 = vmul.f32 %v980, 3.0
          %v1013 = vmul.f32 %v981, 3.0
          %v1014 = vmul.f32 %v982, 3.0
          %v1015 = vmul.f32 %v983, 3.0
          %v1016 = vmul.f32 %v984, 3.0
          %v1017 = vmul.f32 %v985, 3.0
          %v1018 = vmax.f32 %v986, 0.0
          %v1019 = vmax.f32 %v987, 0.0
          %v1020 = vmax.f32 %v988, 0.0
          %v1021 = vmax.f32 %v989, 0.0
          %v1022 = vmax.f32 %v990, 0.0
          %v1023 = vmax.f32 %v991, 0.0
          %v1024 = vmax.f32 %v992, 0.0
          %v1025 = vmax.f32 %v993, 0.0
          %v1026 = vmax.f32 %v994, 0.0
          %v1027 = vmax.f32 %v995, 0.0
          %v1028 = vmax.f32 %v996, 0.0
          %v1029 = vmax.f32 %v997, 0.0
          %v1030 = vmax.f32 %v998, 0.0
          %v1031 = vmax.f32 %v999, 0.0
          %v1032 = vmax.f32 %v1000, 0.0
          %v1033 = vmax.f32 %v1001, 0.0
          %v1034 = vmax.f32 %v1002, 0.0
          %v1035 = vmax.f32 %v1003, 0.0
          %v1036 = vmax.f32 %v1004, 0.0
          %v1037 = vmax.f32 %v1005, 0.0
          %v1038 = vmax.f32 %v1006, 0.0
          %v1039 = vmax.f32 %v1007, 0.0
          %v1040 = vmax.f32 %v1008, 0.0
          %v1041 = vmax.f32 %v1009, 0.0
          %v1042 = vmax.f32 %v1010, 0.0
          %v1043 = vmax.f32 %v1011, 0.0
          %v1044 = vmax.f32 %v1012, 0.0
          %v1045 = vmax.f32 %v1013, 0.0
          %v1046 = vmax.f32 %v1014, 0.0
          %v1047 = vmax.f32 %v1015, 0.0
          %v1048 = vmax.f32 %v1016, 0.0
          %v1049 = vmax.f32 %v1017, 0.0
          %v1050 = vmin.f32 %v1018, 2.0
          %v1051 = vmin.f32 %v1019, 2.0
          %v1052 = vmin.f32 %v1020, 2.0
          %v1053 = vmin.f32 %v1021, 2.0
          %v1054 = vmin.f32 %v1022, 2.0
          %v1055 = vmin.f32 %v1023, 2.0
          %v1056 = vmin.f32 %v1024, 2.0
          %v1057 = vmin.f32 %v1025, 2.0
          %v1058 = vmin.f32 %v1026, 2.0
          %v1059 = vmin.f32 %v1027, 2.0
          %v1060 = vmin.f32 %v1028, 2.0
          %v1061 = vmin.f32 %v1029, 2.0
          %v1062 = vmin.f32 %v1030, 2.0
          %v1063 = vmin.f32 %v1031, 2.0
          %v1064 = vmin.f32 %v1032, 2.0
          %v1065 = vmin.f32 %v1033, 2.0
          %v1066 = vmin.f32 %v1034, 2.0
          %v1067 = vmin.f32 %v1035, 2.0
          %v1068 = vmin.f32 %v1036, 2.0
          %v1069 = vmin.f32 %v1037, 2.0
          %v1070 = vmin.f32 %v1038, 2.0
          %v1071 = vmin.f32 %v1039, 2.0
          %v1072 = vmin.f32 %v1040, 2.0
          %v1073 = vmin.f32 %v1041, 2.0
          %v1074 = vmin.f32 %v1042, 2.0
          %v1075 = vmin.f32 %v1043, 2.0
          %v1076 = vmin.f32 %v1044, 2.0
          %v1077 = vmin.f32 %v1045, 2.0
          %v1078 = vmin.f32 %v1046, 2.0
          %v1079 = vmin.f32 %v1047, 2.0
          %v1080 = vmin.f32 %v1048, 2.0
          %v1081 = vmin.f32 %v1049, 2.0
          %v1082 = vround.ne.pseudo %v1050
          %v1083 = vround.ne.pseudo %v1051
          %v1084 = vround.ne.pseudo %v1052
          %v1085 = vround.ne.pseudo %v1053
          %v1086 = vround.ne.pseudo %v1054
          %v1087 = vround.ne.pseudo %v1055
          %v1088 = vround.ne.pseudo %v1056
          %v1089 = vround.ne.pseudo %v1057
          %v1090 = vround.ne.pseudo %v1058
          %v1091 = vround.ne.pseudo %v1059
          %v1092 = vround.ne.pseudo %v1060
          %v1093 = vround.ne.pseudo %v1061
          %v1094 = vround.ne.pseudo %v1062
          %v1095 = vround.ne.pseudo %v1063
          %v1096 = vround.ne.pseudo %v1064
          %v1097 = vround.ne.pseudo %v1065
          %v1098 = vround.ne.pseudo %v1066
          %v1099 = vround.ne.pseudo %v1067
          %v1100 = vround.ne.pseudo %v1068
          %v1101 = vround.ne.pseudo %v1069
          %v1102 = vround.ne.pseudo %v1070
          %v1103 = vround.ne.pseudo %v1071
          %v1104 = vround.ne.pseudo %v1072
          %v1105 = vround.ne.pseudo %v1073
          %v1106 = vround.ne.pseudo %v1074
          %v1107 = vround.ne.pseudo %v1075
          %v1108 = vround.ne.pseudo %v1076
          %v1109 = vround.ne.pseudo %v1077
          %v1110 = vround.ne.pseudo %v1078
          %v1111 = vround.ne.pseudo %v1079
          %v1112 = vround.ne.pseudo %v1080
          %v1113 = vround.ne.pseudo %v1081
          %v1114 = vmul.f32 %v617, 4.0
          %v1115 = vmul.f32 %v618, 4.0
          %v1116 = vmul.f32 %v619, 4.0
          %v1117 = vmul.f32 %v620, 4.0
          %v1118 = vmul.f32 %v621, 4.0
          %v1119 = vmul.f32 %v622, 4.0
          %v1120 = vmul.f32 %v623, 4.0
          %v1121 = vmul.f32 %v624, 4.0
          %v1122 = vmul.f32 %v625, 4.0
          %v1123 = vmul.f32 %v626, 4.0
          %v1124 = vmul.f32 %v627, 4.0
          %v1125 = vmul.f32 %v628, 4.0
          %v1126 = vmul.f32 %v629, 4.0
          %v1127 = vmul.f32 %v630, 4.0
          %v1128 = vmul.f32 %v631, 4.0
          %v1129 = vmul.f32 %v632, 4.0
          %v1130 = vmul.f32 %v633, 4.0
          %v1131 = vmul.f32 %v634, 4.0
          %v1132 = vmul.f32 %v635, 4.0
          %v1133 = vmul.f32 %v636, 4.0
          %v1134 = vmul.f32 %v637, 4.0
          %v1135 = vmul.f32 %v638, 4.0
          %v1136 = vmul.f32 %v639, 4.0
          %v1137 = vmul.f32 %v640, 4.0
          %v1138 = vmul.f32 %v641, 4.0
          %v1139 = vmul.f32 %v642, 4.0
          %v1140 = vmul.f32 %v643, 4.0
          %v1141 = vmul.f32 %v644, 4.0
          %v1142 = vmul.f32 %v645, 4.0
          %v1143 = vmul.f32 %v646, 4.0
          %v1144 = vmul.f32 %v647, 4.0
          %v1145 = vmul.f32 %v648, 4.0
          %1178 = vrot.lane.b32.xlu0 %v850, 127
          %v1179 = vpop.permute.xlu0 %1178
          %1180 = vrot.lane.b32.xlu0 %v851, 127
          %v1181 = vpop.permute.xlu0 %1180
          %1182 = vrot.lane.b32.xlu0 %v852, 127
          %v1183 = vpop.permute.xlu0 %1182
          %1184 = vrot.lane.b32.xlu0 %v853, 127
          %v1185 = vpop.permute.xlu0 %1184
          %1186 = vrot.lane.b32.xlu0 %v854, 127
          %v1187 = vpop.permute.xlu0 %1186
          %1188 = vrot.lane.b32.xlu0 %v855, 127
          %v1189 = vpop.permute.xlu0 %1188
          %1190 = vrot.lane.b32.xlu0 %v856, 127
          %v1191 = vpop.permute.xlu0 %1190
          %1192 = vrot.lane.b32.xlu0 %v857, 127
          %v1193 = vpop.permute.xlu0 %1192
          %1194 = vrot.lane.b32.xlu0 %v858, 127
          %v1195 = vpop.permute.xlu0 %1194
          %1196 = vrot.lane.b32.xlu0 %v859, 127
          %v1197 = vpop.permute.xlu0 %1196
          %1198 = vrot.lane.b32.xlu0 %v860, 127
          %v1199 = vpop.permute.xlu0 %1198
          %1200 = vrot.lane.b32.xlu0 %v861, 127
          %v1201 = vpop.permute.xlu0 %1200
          %1202 = vrot.lane.b32.xlu0 %v862, 127
          %v1203 = vpop.permute.xlu0 %1202
          %1204 = vrot.lane.b32.xlu0 %v863, 127
          %v1205 = vpop.permute.xlu0 %1204
          %1206 = vrot.lane.b32.xlu0 %v864, 127
          %v1207 = vpop.permute.xlu0 %1206
          %1208 = vrot.lane.b32.xlu0 %v865, 127
          %v1209 = vpop.permute.xlu0 %1208
          %1210 = vrot.lane.b32.xlu0 %v866, 127
          %v1211 = vpop.permute.xlu0 %1210
          %1212 = vrot.lane.b32.xlu0 %v867, 127
          %v1213 = vpop.permute.xlu0 %1212
          %1214 = vrot.lane.b32.xlu0 %v868, 127
          %v1215 = vpop.permute.xlu0 %1214
          %1216 = vrot.lane.b32.xlu0 %v869, 127
          %v1217 = vpop.permute.xlu0 %1216
          %1218 = vrot.lane.b32.xlu0 %v870, 127
          %v1219 = vpop.permute.xlu0 %1218
          %1220 = vrot.lane.b32.xlu0 %v871, 127
          %v1221 = vpop.permute.xlu0 %1220
          %1222 = vrot.lane.b32.xlu0 %v872, 127
          %v1223 = vpop.permute.xlu0 %1222
          %1224 = vrot.lane.b32.xlu0 %v873, 127
          %v1225 = vpop.permute.xlu0 %1224
          %1226 = vrot.lane.b32.xlu0 %v874, 127
          %v1227 = vpop.permute.xlu0 %1226
          %1228 = vrot.lane.b32.xlu0 %v875, 127
          %v1229 = vpop.permute.xlu0 %1228
          %1230 = vrot.lane.b32.xlu0 %v876, 127
          %v1231 = vpop.permute.xlu0 %1230
          %1232 = vrot.lane.b32.xlu0 %v877, 127
          %v1233 = vpop.permute.xlu0 %1232
          %1234 = vrot.lane.b32.xlu0 %v878, 127
          %v1235 = vpop.permute.xlu0 %1234
          %1236 = vrot.lane.b32.xlu0 %v879, 127
          %v1237 = vpop.permute.xlu0 %1236
          %1238 = vrot.lane.b32.xlu0 %v880, 127
          %v1239 = vpop.permute.xlu0 %1238
          %1240 = vrot.lane.b32.xlu0 %v881, 127
          %v1241 = vpop.permute.xlu0 %1240
          %v1274 = vadd.f32 %v1114, %v1179
          %v1275 = vadd.f32 %v1115, %v1181
          %v1276 = vadd.f32 %v1116, %v1183
          %v1277 = vadd.f32 %v1117, %v1185
          %v1278 = vadd.f32 %v1118, %v1187
          %v1279 = vadd.f32 %v1119, %v1189
          %v1280 = vadd.f32 %v1120, %v1191
          %v1281 = vadd.f32 %v1121, %v1193
          %v1282 = vadd.f32 %v1122, %v1195
          %v1283 = vadd.f32 %v1123, %v1197
          %v1284 = vadd.f32 %v1124, %v1199
          %v1285 = vadd.f32 %v1125, %v1201
          %v1286 = vadd.f32 %v1126, %v1203
          %v1287 = vadd.f32 %v1127, %v1205
          %v1288 = vadd.f32 %v1128, %v1207
          %v1289 = vadd.f32 %v1129, %v1209
          %v1290 = vadd.f32 %v1130, %v1211
          %v1291 = vadd.f32 %v1131, %v1213
          %v1292 = vadd.f32 %v1132, %v1215
          %v1293 = vadd.f32 %v1133, %v1217
          %v1294 = vadd.f32 %v1134, %v1219
          %v1295 = vadd.f32 %v1135, %v1221
          %v1296 = vadd.f32 %v1136, %v1223
          %v1297 = vadd.f32 %v1137, %v1225
          %v1298 = vadd.f32 %v1138, %v1227
          %v1299 = vadd.f32 %v1139, %v1229
          %v1300 = vadd.f32 %v1140, %v1231
          %v1301 = vadd.f32 %v1141, %v1233
          %v1302 = vadd.f32 %v1142, %v1235
          %v1303 = vadd.f32 %v1143, %v1237
          %v1304 = vadd.f32 %v1144, %v1239
          %v1305 = vadd.f32 %v1145, %v1241
          %v1306 = vmul.f32 %v1274, 3.0
          %v1307 = vmul.f32 %v1275, 3.0
          %v1308 = vmul.f32 %v1276, 3.0
          %v1309 = vmul.f32 %v1277, 3.0
          %v1310 = vmul.f32 %v1278, 3.0
          %v1311 = vmul.f32 %v1279, 3.0
          %v1312 = vmul.f32 %v1280, 3.0
          %v1313 = vmul.f32 %v1281, 3.0
          %v1314 = vmul.f32 %v1282, 3.0
          %v1315 = vmul.f32 %v1283, 3.0
          %v1316 = vmul.f32 %v1284, 3.0
          %v1317 = vmul.f32 %v1285, 3.0
          %v1318 = vmul.f32 %v1286, 3.0
          %v1319 = vmul.f32 %v1287, 3.0
          %v1320 = vmul.f32 %v1288, 3.0
          %v1321 = vmul.f32 %v1289, 3.0
          %v1322 = vmul.f32 %v1290, 3.0
          %v1323 = vmul.f32 %v1291, 3.0
          %v1324 = vmul.f32 %v1292, 3.0
          %v1325 = vmul.f32 %v1293, 3.0
          %v1326 = vmul.f32 %v1294, 3.0
          %v1327 = vmul.f32 %v1295, 3.0
          %v1328 = vmul.f32 %v1296, 3.0
          %v1329 = vmul.f32 %v1297, 3.0
          %v1330 = vmul.f32 %v1298, 3.0
          %v1331 = vmul.f32 %v1299, 3.0
          %v1332 = vmul.f32 %v1300, 3.0
          %v1333 = vmul.f32 %v1301, 3.0
          %v1334 = vmul.f32 %v1302, 3.0
          %v1335 = vmul.f32 %v1303, 3.0
          %v1336 = vmul.f32 %v1304, 3.0
          %v1337 = vmul.f32 %v1305, 3.0
          %1370 = vrot.lane.b32.xlu0 %v1082, 126
          %v1371 = vpop.permute.xlu0 %1370
          %1372 = vrot.lane.b32.xlu0 %v1083, 126
          %v1373 = vpop.permute.xlu0 %1372
          %1374 = vrot.lane.b32.xlu0 %v1084, 126
          %v1375 = vpop.permute.xlu0 %1374
          %1376 = vrot.lane.b32.xlu0 %v1085, 126
          %v1377 = vpop.permute.xlu0 %1376
          %1378 = vrot.lane.b32.xlu0 %v1086, 126
          %v1379 = vpop.permute.xlu0 %1378
          %1380 = vrot.lane.b32.xlu0 %v1087, 126
          %v1381 = vpop.permute.xlu0 %1380
          %1382 = vrot.lane.b32.xlu0 %v1088, 126
          %v1383 = vpop.permute.xlu0 %1382
          %1384 = vrot.lane.b32.xlu0 %v1089, 126
          %v1385 = vpop.permute.xlu0 %1384
          %1386 = vrot.lane.b32.xlu0 %v1090, 126
          %v1387 = vpop.permute.xlu0 %1386
          %1388 = vrot.lane.b32.xlu0 %v1091, 126
          %v1389 = vpop.permute.xlu0 %1388
          %1390 = vrot.lane.b32.xlu0 %v1092, 126
          %v1391 = vpop.permute.xlu0 %1390
          %1392 = vrot.lane.b32.xlu0 %v1093, 126
          %v1393 = vpop.permute.xlu0 %1392
          %1394 = vrot.lane.b32.xlu0 %v1094, 126
          %v1395 = vpop.permute.xlu0 %1394
          %1396 = vrot.lane.b32.xlu0 %v1095, 126
          %v1397 = vpop.permute.xlu0 %1396
          %1398 = vrot.lane.b32.xlu0 %v1096, 126
          %v1399 = vpop.permute.xlu0 %1398
          %1400 = vrot.lane.b32.xlu0 %v1097, 126
          %v1401 = vpop.permute.xlu0 %1400
          %1402 = vrot.lane.b32.xlu0 %v1098, 126
          %v1403 = vpop.permute.xlu0 %1402
          %1404 = vrot.lane.b32.xlu0 %v1099, 126
          %v1405 = vpop.permute.xlu0 %1404
          %1406 = vrot.lane.b32.xlu0 %v1100, 126
          %v1407 = vpop.permute.xlu0 %1406
          %1408 = vrot.lane.b32.xlu0 %v1101, 126
          %v1409 = vpop.permute.xlu0 %1408
          %1410 = vrot.lane.b32.xlu0 %v1102, 126
          %v1411 = vpop.permute.xlu0 %1410
          %1412 = vrot.lane.b32.xlu0 %v1103, 126
          %v1413 = vpop.permute.xlu0 %1412
          %1414 = vrot.lane.b32.xlu0 %v1104, 126
          %v1415 = vpop.permute.xlu0 %1414
          %1416 = vrot.lane.b32.xlu0 %v1105, 126
          %v1417 = vpop.permute.xlu0 %1416
          %1418 = vrot.lane.b32.xlu0 %v1106, 126
          %v1419 = vpop.permute.xlu0 %1418
          %1420 = vrot.lane.b32.xlu0 %v1107, 126
          %v1421 = vpop.permute.xlu0 %1420
          %1422 = vrot.lane.b32.xlu0 %v1108, 126
          %v1423 = vpop.permute.xlu0 %1422
          %1424 = vrot.lane.b32.xlu0 %v1109, 126
          %v1425 = vpop.permute.xlu0 %1424
          %1426 = vrot.lane.b32.xlu0 %v1110, 126
          %v1427 = vpop.permute.xlu0 %1426
          %1428 = vrot.lane.b32.xlu0 %v1111, 126
          %v1429 = vpop.permute.xlu0 %1428
          %1430 = vrot.lane.b32.xlu0 %v1112, 126
          %v1431 = vpop.permute.xlu0 %1430
          %1432 = vrot.lane.b32.xlu0 %v1113, 126
          %v1433 = vpop.permute.xlu0 %1432
          %v1466 = vadd.f32 %v1306, %v1371
          %v1467 = vadd.f32 %v1307, %v1373
          %v1468 = vadd.f32 %v1308, %v1375
          %v1469 = vadd.f32 %v1309, %v1377
          %v1470 = vadd.f32 %v1310, %v1379
          %v1471 = vadd.f32 %v1311, %v1381
          %v1472 = vadd.f32 %v1312, %v1383
          %v1473 = vadd.f32 %v1313, %v1385
          %v1474 = vadd.f32 %v1314, %v1387
          %v1475 = vadd.f32 %v1315, %v1389
          %v1476 = vadd.f32 %v1316, %v1391
          %v1477 = vadd.f32 %v1317, %v1393
          %v1478 = vadd.f32 %v1318, %v1395
          %v1479 = vadd.f32 %v1319, %v1397
          %v1480 = vadd.f32 %v1320, %v1399
          %v1481 = vadd.f32 %v1321, %v1401
          %v1482 = vadd.f32 %v1322, %v1403
          %v1483 = vadd.f32 %v1323, %v1405
          %v1484 = vadd.f32 %v1324, %v1407
          %v1485 = vadd.f32 %v1325, %v1409
          %v1486 = vadd.f32 %v1326, %v1411
          %v1487 = vadd.f32 %v1327, %v1413
          %v1488 = vadd.f32 %v1328, %v1415
          %v1489 = vadd.f32 %v1329, %v1417
          %v1490 = vadd.f32 %v1330, %v1419
          %v1491 = vadd.f32 %v1331, %v1421
          %v1492 = vadd.f32 %v1332, %v1423
          %v1493 = vadd.f32 %v1333, %v1425
          %v1494 = vadd.f32 %v1334, %v1427
          %v1495 = vadd.f32 %v1335, %v1429
          %v1496 = vadd.f32 %v1336, %v1431
          %v1497 = vadd.f32 %v1337, %v1433
          %v1498 = vlaneseq
          %v1499 = vshrl.u32 %v1498, 7
          %v1500 = vadd.s32 %v1499, 8
          %v1501 = vadd.s32 %v1499, 16
          %v1502 = vadd.s32 %v1499, 24
          %v1503 = vadd.s32 %v1499, 32
          %v1504 = vadd.s32 %v1499, 40
          %v1505 = vadd.s32 %v1499, 48
          %v1506 = vadd.s32 %v1499, 56
          %v1507 = vadd.s32 %v1499, 64
          %v1508 = vadd.s32 %v1499, 72
          %v1509 = vadd.s32 %v1499, 80
          %v1510 = vadd.s32 %v1499, 88
          %v1511 = vadd.s32 %v1499, 96
          %v1512 = vadd.s32 %v1499, 104
          %v1513 = vadd.s32 %v1499, 112
          %v1514 = vadd.s32 %v1499, 120
          %v1515 = vadd.s32 %v1499, 128
          %v1516 = vadd.s32 %v1499, 136
          %v1517 = vadd.s32 %v1499, 144
          %v1518 = vadd.s32 %v1499, 152
          %v1519 = vadd.s32 %v1499, 160
          %v1520 = vadd.s32 %v1499, 168
          %v1521 = vadd.s32 %v1499, 176
          %v1522 = vadd.s32 %v1499, 184
          %v1523 = vadd.s32 %v1499, 192
          %v1524 = vadd.s32 %v1499, 200
          %v1525 = vadd.s32 %v1499, 208
          %v1526 = vadd.s32 %v1499, 216
          %v1527 = vadd.s32 %v1499, 224
          %v1528 = vadd.s32 %v1499, 232
          %v1529 = vadd.s32 %v1499, 240
          %v1530 = vadd.s32 %v1499, 248
          %vm1531 = vcmp.lt.s32.totalorder %v1499, 200
          %vm1532 = vcmp.lt.s32.totalorder %v1500, 200
          %vm1533 = vcmp.lt.s32.totalorder %v1501, 200
          %vm1534 = vcmp.lt.s32.totalorder %v1502, 200
          %vm1535 = vcmp.lt.s32.totalorder %v1503, 200
          %vm1536 = vcmp.lt.s32.totalorder %v1504, 200
          %vm1537 = vcmp.lt.s32.totalorder %v1505, 200
          %vm1538 = vcmp.lt.s32.totalorder %v1506, 200
          %vm1539 = vcmp.lt.s32.totalorder %v1507, 200
          %vm1540 = vcmp.lt.s32.totalorder %v1508, 200
          %vm1541 = vcmp.lt.s32.totalorder %v1509, 200
          %vm1542 = vcmp.lt.s32.totalorder %v1510, 200
          %vm1543 = vcmp.lt.s32.totalorder %v1511, 200
          %vm1544 = vcmp.lt.s32.totalorder %v1512, 200
          %vm1545 = vcmp.lt.s32.totalorder %v1513, 200
          %vm1546 = vcmp.lt.s32.totalorder %v1514, 200
          %vm1547 = vcmp.lt.s32.totalorder %v1515, 200
          %vm1548 = vcmp.lt.s32.totalorder %v1516, 200
          %vm1549 = vcmp.lt.s32.totalorder %v1517, 200
          %vm1550 = vcmp.lt.s32.totalorder %v1518, 200
          %vm1551 = vcmp.lt.s32.totalorder %v1519, 200
          %vm1552 = vcmp.lt.s32.totalorder %v1520, 200
          %vm1553 = vcmp.lt.s32.totalorder %v1521, 200
          %vm1554 = vcmp.lt.s32.totalorder %v1522, 200
          %vm1555 = vcmp.lt.s32.totalorder %v1523, 200
          %vm1556 = vcmp.lt.s32.totalorder %v1524, 200
          %vm1557 = vcmp.lt.s32.totalorder %v1525, 200
          %vm1558 = vcmp.lt.s32.totalorder %v1526, 200
          %vm1559 = vcmp.lt.s32.totalorder %v1527, 200
          %vm1560 = vcmp.lt.s32.totalorder %v1528, 200
          %vm1561 = vcmp.lt.s32.totalorder %v1529, 200
          %vm1562 = vcmp.lt.s32.totalorder %v1530, 200
          %v1563 = vcvt.f32.s32.to.zero.pseudo %v1466
          %v1564 = vcvt.f32.s32.to.zero.pseudo %v1467
          %v1565 = vcvt.f32.s32.to.zero.pseudo %v1468
          %v1566 = vcvt.f32.s32.to.zero.pseudo %v1469
          %v1567 = vcvt.f32.s32.to.zero.pseudo %v1470
          %v1568 = vcvt.f32.s32.to.zero.pseudo %v1471
          %v1569 = vcvt.f32.s32.to.zero.pseudo %v1472
          %v1570 = vcvt.f32.s32.to.zero.pseudo %v1473
          %v1571 = vcvt.f32.s32.to.zero.pseudo %v1474
          %v1572 = vcvt.f32.s32.to.zero.pseudo %v1475
          %v1573 = vcvt.f32.s32.to.zero.pseudo %v1476
          %v1574 = vcvt.f32.s32.to.zero.pseudo %v1477
          %v1575 = vcvt.f32.s32.to.zero.pseudo %v1478
          %v1576 = vcvt.f32.s32.to.zero.pseudo %v1479
          %v1577 = vcvt.f32.s32.to.zero.pseudo %v1480
          %v1578 = vcvt.f32.s32.to.zero.pseudo %v1481
          %v1579 = vcvt.f32.s32.to.zero.pseudo %v1482
          %v1580 = vcvt.f32.s32.to.zero.pseudo %v1483
          %v1581 = vcvt.f32.s32.to.zero.pseudo %v1484
          %v1582 = vcvt.f32.s32.to.zero.pseudo %v1485
          %v1583 = vcvt.f32.s32.to.zero.pseudo %v1486
          %v1584 = vcvt.f32.s32.to.zero.pseudo %v1487
          %v1585 = vcvt.f32.s32.to.zero.pseudo %v1488
          %v1586 = vcvt.f32.s32.to.zero.pseudo %v1489
          %v1587 = vcvt.f32.s32.to.zero.pseudo %v1490
          %v1588 = vcvt.f32.s32.to.zero.pseudo %v1491
          %v1589 = vcvt.f32.s32.to.zero.pseudo %v1492
          %v1590 = vcvt.f32.s32.to.zero.pseudo %v1493
          %v1591 = vcvt.f32.s32.to.zero.pseudo %v1494
          %v1592 = vcvt.f32.s32.to.zero.pseudo %v1495
          %v1593 = vcvt.f32.s32.to.zero.pseudo %v1496
          %v1594 = vcvt.f32.s32.to.zero.pseudo %v1497
          %v1595 = vsel %vm1531, %v1563, 4294967295
          %v1596 = vsel %vm1532, %v1564, 4294967295
          %v1597 = vsel %vm1533, %v1565, 4294967295
          %v1598 = vsel %vm1534, %v1566, 4294967295
          %v1599 = vsel %vm1535, %v1567, 4294967295
          %v1600 = vsel %vm1536, %v1568, 4294967295
          %v1601 = vsel %vm1537, %v1569, 4294967295
          %v1602 = vsel %vm1538, %v1570, 4294967295
          %v1603 = vsel %vm1539, %v1571, 4294967295
          %v1604 = vsel %vm1540, %v1572, 4294967295
          %v1605 = vsel %vm1541, %v1573, 4294967295
          %v1606 = vsel %vm1542, %v1574, 4294967295
          %v1607 = vsel %vm1543, %v1575, 4294967295
          %v1608 = vsel %vm1544, %v1576, 4294967295
          %v1609 = vsel %vm1545, %v1577, 4294967295
          %v1610 = vsel %vm1546, %v1578, 4294967295
          %v1611 = vsel %vm1547, %v1579, 4294967295
          %v1612 = vsel %vm1548, %v1580, 4294967295
          %v1613 = vsel %vm1549, %v1581, 4294967295
          %v1614 = vsel %vm1550, %v1582, 4294967295
          %v1615 = vsel %vm1551, %v1583, 4294967295
          %v1616 = vsel %vm1552, %v1584, 4294967295
          %v1617 = vsel %vm1553, %v1585, 4294967295
          %v1618 = vsel %vm1554, %v1586, 4294967295
          %v1619 = vsel %vm1555, %v1587, 4294967295
          %v1620 = vsel %vm1556, %v1588, 4294967295
          %v1621 = vsel %vm1557, %v1589, 4294967295
          %v1622 = vsel %vm1558, %v1590, 4294967295
          %v1623 = vsel %vm1559, %v1591, 4294967295
          %v1624 = vsel %vm1560, %v1592, 4294967295
          %v1625 = vsel %vm1561, %v1593, 4294967295
          %v1626 = vsel %vm1562, %v1594, 4294967295
          %vm1627 = vcmask 7168
          %1628 = vst.msk [vmem:[#allocation2] sm:$0xff] %vm1627, %v1595
          %1629 = vst.msk [vmem:[#allocation2 + $0x8] sm:$0xff] %vm1627, %v1596
          %1630 = vst.msk [vmem:[#allocation2 + $0x10] sm:$0xff] %vm1627, %v1597
          %1631 = vst.msk [vmem:[#allocation2 + $0x18] sm:$0xff] %vm1627, %v1598
          %1632 = vst.msk [vmem:[#allocation2 + $0x20] sm:$0xff] %vm1627, %v1599
          %1633 = vst.msk [vmem:[#allocation2 + $0x28] sm:$0xff] %vm1627, %v1600
          %1634 = vst.msk [vmem:[#allocation2 + $0x30] sm:$0xff] %vm1627, %v1601
          %1635 = vst.msk [vmem:[#allocation2 + $0x38] sm:$0xff] %vm1627, %v1602
          %1636 = vst.msk [vmem:[#allocation2 + $0x40] sm:$0xff] %vm1627, %v1603
          %1637 = vst.msk [vmem:[#allocation2 + $0x48] sm:$0xff] %vm1627, %v1604
          %1638 = vst.msk [vmem:[#allocation2 + $0x50] sm:$0xff] %vm1627, %v1605
          %1639 = vst.msk [vmem:[#allocation2 + $0x58] sm:$0xff] %vm1627, %v1606
          %1640 = vst.msk [vmem:[#allocation2 + $0x60] sm:$0xff] %vm1627, %v1607
          %1641 = vst.msk [vmem:[#allocation2 + $0x68] sm:$0xff] %vm1627, %v1608
          %1642 = vst.msk [vmem:[#allocation2 + $0x70] sm:$0xff] %vm1627, %v1609
          %1643 = vst.msk [vmem:[#allocation2 + $0x78] sm:$0xff] %vm1627, %v1610
          %1644 = vst.msk [vmem:[#allocation2 + $0x80] sm:$0xff] %vm1627, %v1611
          %1645 = vst.msk [vmem:[#allocation2 + $0x88] sm:$0xff] %vm1627, %v1612
          %1646 = vst.msk [vmem:[#allocation2 + $0x90] sm:$0xff] %vm1627, %v1613
          %1647 = vst.msk [vmem:[#allocation2 + $0x98] sm:$0xff] %vm1627, %v1614
          %1648 = vst.msk [vmem:[#allocation2 + $0xa0] sm:$0xff] %vm1627, %v1615
          %1649 = vst.msk [vmem:[#allocation2 + $0xa8] sm:$0xff] %vm1627, %v1616
          %1650 = vst.msk [vmem:[#allocation2 + $0xb0] sm:$0xff] %vm1627, %v1617
          %1651 = vst.msk [vmem:[#allocation2 + $0xb8] sm:$0xff] %vm1627, %v1618
          %1652 = vst.msk [vmem:[#allocation2 + $0xc0] sm:$0xff] %vm1627, %v1619
          %1653 = vst.msk [vmem:[#allocation2 + $0xc8] sm:$0xff] %vm1627, %v1620
          %1654 = vst.msk [vmem:[#allocation2 + $0xd0] sm:$0xff] %vm1627, %v1621
          %1655 = vst.msk [vmem:[#allocation2 + $0xd8] sm:$0xff] %vm1627, %v1622
          %1656 = vst.msk [vmem:[#allocation2 + $0xe0] sm:$0xff] %vm1627, %v1623
          %1657 = vst.msk [vmem:[#allocation2 + $0xe8] sm:$0xff] %vm1627, %v1624
          %1658 = vst.msk [vmem:[#allocation2 + $0xf0] sm:$0xff] %vm1627, %v1625
          %1659 = vst.msk [vmem:[#allocation2 + $0xf8] sm:$0xff] %vm1627, %v1626
        $region36: #{tpu_custom_call.1} parent=31 // pred_fallthru
          _
        %v1660 = vld [vmem:[%s247] sm:$0xff]
        %v1661 = vld [vmem:[%s247 + $0x8] sm:$0xff]
        %v1662 = vlaneseq
        %v1663 = vand.u32 %v1662, 127
        %s1664 = smul.u32 %s24, 48
        %v1665 = vstv %s1664
        %v1666 = vadd.s32 %v1663, %v1665
        %v1667 = vld [vmem:[#allocation2] sm:$0xff]
        %v1668 = vld [vmem:[#allocation2 + $0x8] sm:$0xff]
        %v1669 = vld [vmem:[#allocation2 + $0x10] sm:$0xff]
        %v1670 = vld [vmem:[#allocation2 + $0x18] sm:$0xff]
        %v1671 = vld [vmem:[#allocation2 + $0x20] sm:$0xff]
        %v1672 = vld [vmem:[#allocation2 + $0x28] sm:$0xff]
        %v1673 = vld [vmem:[#allocation2 + $0x30] sm:$0xff]
        %v1674 = vld [vmem:[#allocation2 + $0x38] sm:$0xff]
        %v1675 = vld [vmem:[#allocation2 + $0x40] sm:$0xff]
        %v1676 = vld [vmem:[#allocation2 + $0x48] sm:$0xff]
        %v1677 = vld [vmem:[#allocation2 + $0x50] sm:$0xff]
        %v1678 = vld [vmem:[#allocation2 + $0x58] sm:$0xff]
        %v1679 = vld [vmem:[#allocation2 + $0x60] sm:$0xff]
        %v1680 = vld [vmem:[#allocation2 + $0x68] sm:$0xff]
        %v1681 = vld [vmem:[#allocation2 + $0x70] sm:$0xff]
        %v1682 = vld [vmem:[#allocation2 + $0x78] sm:$0xff]
        %v1683 = vld [vmem:[#allocation2 + $0x80] sm:$0xff]
        %v1684 = vld [vmem:[#allocation2 + $0x88] sm:$0xff]
        %v1685 = vld [vmem:[#allocation2 + $0x90] sm:$0xff]
        %v1686 = vld [vmem:[#allocation2 + $0x98] sm:$0xff]
        %v1687 = vld [vmem:[#allocation2 + $0xa0] sm:$0xff]
        %v1688 = vld [vmem:[#allocation2 + $0xa8] sm:$0xff]
        %v1689 = vld [vmem:[#allocation2 + $0xb0] sm:$0xff]
        %v1690 = vld [vmem:[#allocation2 + $0xb8] sm:$0xff]
        %v1691 = vld [vmem:[#allocation2 + $0xc0] sm:$0xff]
        %v1692 = vld [vmem:[#allocation2 + $0xc8] sm:$0xff]
        %v1693 = vld [vmem:[#allocation2 + $0xd0] sm:$0xff]
        %v1694 = vld [vmem:[#allocation2 + $0xd8] sm:$0xff]
        %v1695 = vld [vmem:[#allocation2 + $0xe0] sm:$0xff]
        %v1696 = vld [vmem:[#allocation2 + $0xe8] sm:$0xff]
        %v1697 = vld [vmem:[#allocation2 + $0xf0] sm:$0xff]
        %v1698 = vld [vmem:[#allocation2 + $0xf8] sm:$0xff]
        %1699 = vset.pattern.permute.xlu0 0
        %1700 = vperm.xlu0 %1699, %v1667
        %v1701 = vpop.permute.xlu0 %1700
        %1702 = vset.pattern.permute.xlu0 0
        %1703 = vperm.xlu0 %1702, %v1668
        %v1704 = vpop.permute.xlu0 %1703
        %1705 = vset.pattern.permute.xlu0 0
        %1706 = vperm.xlu0 %1705, %v1669
        %v1707 = vpop.permute.xlu0 %1706
        %1708 = vset.pattern.permute.xlu0 0
        %1709 = vperm.xlu0 %1708, %v1670
        %v1710 = vpop.permute.xlu0 %1709
        %1711 = vset.pattern.permute.xlu0 0
        %1712 = vperm.xlu0 %1711, %v1671
        %v1713 = vpop.permute.xlu0 %1712
        %1714 = vset.pattern.permute.xlu0 0
        %1715 = vperm.xlu0 %1714, %v1672
        %v1716 = vpop.permute.xlu0 %1715
        %1717 = vset.pattern.permute.xlu0 0
        %1718 = vperm.xlu0 %1717, %v1673
        %v1719 = vpop.permute.xlu0 %1718
        %1720 = vset.pattern.permute.xlu0 0
        %1721 = vperm.xlu0 %1720, %v1674
        %v1722 = vpop.permute.xlu0 %1721
        %1723 = vset.pattern.permute.xlu0 0
        %1724 = vperm.xlu0 %1723, %v1675
        %v1725 = vpop.permute.xlu0 %1724
        %1726 = vset.pattern.permute.xlu0 0
        %1727 = vperm.xlu0 %1726, %v1676
        %v1728 = vpop.permute.xlu0 %1727
        %1729 = vset.pattern.permute.xlu0 0
        %1730 = vperm.xlu0 %1729, %v1677
        %v1731 = vpop.permute.xlu0 %1730
        %1732 = vset.pattern.permute.xlu0 0
        %1733 = vperm.xlu0 %1732, %v1678
        %v1734 = vpop.permute.xlu0 %1733
        %1735 = vset.pattern.permute.xlu0 0
        %1736 = vperm.xlu0 %1735, %v1679
        %v1737 = vpop.permute.xlu0 %1736
        %1738 = vset.pattern.permute.xlu0 0
        %1739 = vperm.xlu0 %1738, %v1680
        %v1740 = vpop.permute.xlu0 %1739
        %1741 = vset.pattern.permute.xlu0 0
        %1742 = vperm.xlu0 %1741, %v1681
        %v1743 = vpop.permute.xlu0 %1742
        %1744 = vset.pattern.permute.xlu0 0
        %1745 = vperm.xlu0 %1744, %v1682
        %v1746 = vpop.permute.xlu0 %1745
        %1747 = vset.pattern.permute.xlu0 0
        %1748 = vperm.xlu0 %1747, %v1683
        %v1749 = vpop.permute.xlu0 %1748
        %1750 = vset.pattern.permute.xlu0 0
        %1751 = vperm.xlu0 %1750, %v1684
        %v1752 = vpop.permute.xlu0 %1751
        %1753 = vset.pattern.permute.xlu0 0
        %1754 = vperm.xlu0 %1753, %v1685
        %v1755 = vpop.permute.xlu0 %1754
        %1756 = vset.pattern.permute.xlu0 0
        %1757 = vperm.xlu0 %1756, %v1686
        %v1758 = vpop.permute.xlu0 %1757
        %1759 = vset.pattern.permute.xlu0 0
        %1760 = vperm.xlu0 %1759, %v1687
        %v1761 = vpop.permute.xlu0 %1760
        %1762 = vset.pattern.permute.xlu0 0
        %1763 = vperm.xlu0 %1762, %v1688
        %v1764 = vpop.permute.xlu0 %1763
        %1765 = vset.pattern.permute.xlu0 0
        %1766 = vperm.xlu0 %1765, %v1689
        %v1767 = vpop.permute.xlu0 %1766
        %1768 = vset.pattern.permute.xlu0 0
        %1769 = vperm.xlu0 %1768, %v1690
        %v1770 = vpop.permute.xlu0 %1769
        %1771 = vset.pattern.permute.xlu0 0
        %1772 = vperm.xlu0 %1771, %v1691
        %v1773 = vpop.permute.xlu0 %1772
        %1774 = vset.pattern.permute.xlu0 0
        %1775 = vperm.xlu0 %1774, %v1692
        %v1776 = vpop.permute.xlu0 %1775
        %1777 = vset.pattern.permute.xlu0 0
        %1778 = vperm.xlu0 %1777, %v1693
        %v1779 = vpop.permute.xlu0 %1778
        %1780 = vset.pattern.permute.xlu0 0
        %1781 = vperm.xlu0 %1780, %v1694
        %v1782 = vpop.permute.xlu0 %1781
        %1783 = vset.pattern.permute.xlu0 0
        %1784 = vperm.xlu0 %1783, %v1695
        %v1785 = vpop.permute.xlu0 %1784
        %1786 = vset.pattern.permute.xlu0 0
        %1787 = vperm.xlu0 %1786, %v1696
        %v1788 = vpop.permute.xlu0 %1787
        %1789 = vset.pattern.permute.xlu0 0
        %1790 = vperm.xlu0 %1789, %v1697
        %v1791 = vpop.permute.xlu0 %1790
        %1792 = vset.pattern.permute.xlu0 0
        %1793 = vperm.xlu0 %1792, %v1698
        %v1794 = vpop.permute.xlu0 %1793
        %vm1795 = vcmp.eq.s32.totalorder %v1666, %v1701
        %vm1796 = vcmp.eq.s32.totalorder %v1666, %v1704
        %vm1797 = vcmp.eq.s32.totalorder %v1666, %v1707
        %vm1798 = vcmp.eq.s32.totalorder %v1666, %v1710
        %vm1799 = vcmp.eq.s32.totalorder %v1666, %v1713
        %vm1800 = vcmp.eq.s32.totalorder %v1666, %v1716
        %vm1801 = vcmp.eq.s32.totalorder %v1666, %v1719
        %vm1802 = vcmp.eq.s32.totalorder %v1666, %v1722
        %vm1803 = vcmp.eq.s32.totalorder %v1666, %v1725
        %vm1804 = vcmp.eq.s32.totalorder %v1666, %v1728
        %vm1805 = vcmp.eq.s32.totalorder %v1666, %v1731
        %vm1806 = vcmp.eq.s32.totalorder %v1666, %v1734
        %vm1807 = vcmp.eq.s32.totalorder %v1666, %v1737
        %vm1808 = vcmp.eq.s32.totalorder %v1666, %v1740
        %vm1809 = vcmp.eq.s32.totalorder %v1666, %v1743
        %vm1810 = vcmp.eq.s32.totalorder %v1666, %v1746
        %vm1811 = vcmp.eq.s32.totalorder %v1666, %v1749
        %vm1812 = vcmp.eq.s32.totalorder %v1666, %v1752
        %vm1813 = vcmp.eq.s32.totalorder %v1666, %v1755
        %vm1814 = vcmp.eq.s32.totalorder %v1666, %v1758
        %vm1815 = vcmp.eq.s32.totalorder %v1666, %v1761
        %vm1816 = vcmp.eq.s32.totalorder %v1666, %v1764
        %vm1817 = vcmp.eq.s32.totalorder %v1666, %v1767
        %vm1818 = vcmp.eq.s32.totalorder %v1666, %v1770
        %vm1819 = vcmp.eq.s32.totalorder %v1666, %v1773
        %vm1820 = vcmp.eq.s32.totalorder %v1666, %v1776
        %vm1821 = vcmp.eq.s32.totalorder %v1666, %v1779
        %vm1822 = vcmp.eq.s32.totalorder %v1666, %v1782
        %vm1823 = vcmp.eq.s32.totalorder %v1666, %v1785
        %vm1824 = vcmp.eq.s32.totalorder %v1666, %v1788
        %vm1825 = vcmp.eq.s32.totalorder %v1666, %v1791
        %vm1826 = vcmp.eq.s32.totalorder %v1666, %v1794
        %v1827 = vsel %vm1795, 1, 0
        %v1828 = vsel %vm1796, 1, 0
        %v1829 = vsel %vm1797, 1, 0
        %v1830 = vsel %vm1798, 1, 0
        %v1831 = vsel %vm1799, 1, 0
        %v1832 = vsel %vm1800, 1, 0
        %v1833 = vsel %vm1801, 1, 0
        %v1834 = vsel %vm1802, 1, 0
        %v1835 = vsel %vm1803, 1, 0
        %v1836 = vsel %vm1804, 1, 0
        %v1837 = vsel %vm1805, 1, 0
        %v1838 = vsel %vm1806, 1, 0
        %v1839 = vsel %vm1807, 1, 0
        %v1840 = vsel %vm1808, 1, 0
        %v1841 = vsel %vm1809, 1, 0
        %v1842 = vsel %vm1810, 1, 0
        %v1843 = vsel %vm1811, 1, 0
        %v1844 = vsel %vm1812, 1, 0
        %v1845 = vsel %vm1813, 1, 0
        %v1846 = vsel %vm1814, 1, 0
        %v1847 = vsel %vm1815, 1, 0
        %v1848 = vsel %vm1816, 1, 0
        %v1849 = vsel %vm1817, 1, 0
        %v1850 = vsel %vm1818, 1, 0
        %v1851 = vsel %vm1819, 1, 0
        %v1852 = vsel %vm1820, 1, 0
        %v1853 = vsel %vm1821, 1, 0
        %v1854 = vsel %vm1822, 1, 0
        %v1855 = vsel %vm1823, 1, 0
        %v1856 = vsel %vm1824, 1, 0
        %v1857 = vsel %vm1825, 1, 0
        %v1858 = vsel %vm1826, 1, 0
        %v1859 = vcvt.s32.f32 %v1827
        %v1860 = vcvt.s32.f32 %v1828
        %v1861 = vcvt.s32.f32 %v1829
        %v1862 = vcvt.s32.f32 %v1830
        %v1863 = vcvt.s32.f32 %v1831
        %v1864 = vcvt.s32.f32 %v1832
        %v1865 = vcvt.s32.f32 %v1833
        %v1866 = vcvt.s32.f32 %v1834
        %v1867 = vcvt.s32.f32 %v1835
        %v1868 = vcvt.s32.f32 %v1836
        %v1869 = vcvt.s32.f32 %v1837
        %v1870 = vcvt.s32.f32 %v1838
        %v1871 = vcvt.s32.f32 %v1839
        %v1872 = vcvt.s32.f32 %v1840
        %v1873 = vcvt.s32.f32 %v1841
        %v1874 = vcvt.s32.f32 %v1842
        %v1875 = vcvt.s32.f32 %v1843
        %v1876 = vcvt.s32.f32 %v1844
        %v1877 = vcvt.s32.f32 %v1845
        %v1878 = vcvt.s32.f32 %v1846
        %v1879 = vcvt.s32.f32 %v1847
        %v1880 = vcvt.s32.f32 %v1848
        %v1881 = vcvt.s32.f32 %v1849
        %v1882 = vcvt.s32.f32 %v1850
        %v1883 = vcvt.s32.f32 %v1851
        %v1884 = vcvt.s32.f32 %v1852
        %v1885 = vcvt.s32.f32 %v1853
        %v1886 = vcvt.s32.f32 %v1854
        %v1887 = vcvt.s32.f32 %v1855
        %v1888 = vcvt.s32.f32 %v1856
        %v1889 = vcvt.s32.f32 %v1857
        %v1890 = vcvt.s32.f32 %v1858
        %1891 = vmatprep.subr.mxu0 0.0
        %1892 = vmatpush1.msra.mxu0 %v1859
        %1893 = vmatprep.subr.mxu0 0.0
        %1894 = vmatpush1.msra.mxu0 %v1860
        %1895 = vmatprep.subr.mxu0 0.0
        %1896 = vmatpush1.msra.mxu0 %v1861
        %1897 = vmatprep.subr.mxu0 0.0
        %1898 = vmatpush1.msra.mxu0 %v1862
        %1899 = vmatprep.subr.mxu0 0.0
        %1900 = vmatpush1.msra.mxu0 %v1863
        %1901 = vmatprep.subr.mxu0 0.0
        %1902 = vmatpush1.msra.mxu0 %v1864
        %1903 = vmatprep.subr.mxu0 0.0
        %1904 = vmatpush1.msra.mxu0 %v1865
        %1905 = vmatprep.subr.mxu0 0.0
        %1906 = vmatpush1.msra.mxu0 %v1866
        %1907 = vmatprep.subr.mxu0 0.0
        %1908 = vmatpush1.msra.mxu0 %v1867
        %1909 = vmatprep.subr.mxu0 0.0
        %1910 = vmatpush1.msra.mxu0 %v1868
        %1911 = vmatprep.subr.mxu0 0.0
        %1912 = vmatpush1.msra.mxu0 %v1869
        %1913 = vmatprep.subr.mxu0 0.0
        %1914 = vmatpush1.msra.mxu0 %v1870
        %1915 = vmatprep.subr.mxu0 0.0
        %1916 = vmatpush1.msra.mxu0 %v1871
        %1917 = vmatprep.subr.mxu0 0.0
        %1918 = vmatpush1.msra.mxu0 %v1872
        %1919 = vmatprep.subr.mxu0 0.0
        %1920 = vmatpush1.msra.mxu0 %v1873
        %1921 = vmatprep.subr.mxu0 0.0
        %1922 = vmatpush1.msra.mxu0 %v1874
        %1923 = vmatprep.subr.mxu0 0.0
        %1924 = vmatpush1.msra.mxu0 %v1875
        %1925 = vmatprep.subr.mxu0 0.0
        %1926 = vmatpush1.msra.mxu0 %v1876
        %1927 = vmatprep.subr.mxu0 0.0
        %1928 = vmatpush1.msra.mxu0 %v1877
        %1929 = vmatprep.subr.mxu0 0.0
        %1930 = vmatpush1.msra.mxu0 %v1878
        %1931 = vmatprep.subr.mxu0 0.0
        %1932 = vmatpush1.msra.mxu0 %v1879
        %1933 = vmatprep.subr.mxu0 0.0
        %1934 = vmatpush1.msra.mxu0 %v1880
        %1935 = vmatprep.subr.mxu0 0.0
        %1936 = vmatpush1.msra.mxu0 %v1881
        %1937 = vmatprep.subr.mxu0 0.0
        %1938 = vmatpush1.msra.mxu0 %v1882
        %1939 = vmatprep.subr.mxu0 0.0
        %1940 = vmatpush1.msra.mxu0 %v1883
        %1941 = vmatprep.subr.mxu0 0.0
        %1942 = vmatpush1.msra.mxu0 %v1884
        %1943 = vmatprep.subr.mxu0 0.0
        %1944 = vmatpush1.msra.mxu0 %v1885
        %1945 = vmatprep.subr.mxu0 0.0
        %1946 = vmatpush1.msra.mxu0 %v1886
        %1947 = vmatprep.subr.mxu0 0.0
        %1948 = vmatpush1.msra.mxu0 %v1887
        %1949 = vmatprep.subr.mxu0 0.0
        %1950 = vmatpush1.msra.mxu0 %v1888
        %1951 = vmatprep.subr.mxu0 0.0
        %1952 = vmatpush1.msra.mxu0 %v1889
        %1953 = vmatprep.subr.mxu0 0.0
        %1954 = vmatpush1.msra.mxu0 %v1890
        %1955 = vmatprep.mubr.f32.mxu0 %v1661
        %1956 = vmatmul.mubr.f32.gmra.mrb[0].mxu0 %v1660
        %v1957 = vpop.f32.mrb[0].mxu0
        %v1958 = vadd.f32 0.0, %v1957
        %v1959 = vpop.f32.mrb[0].mxu0
        %1960 = vdwg.mxu0
        %v1961 = vmax.f32 %v1958, 1.0
        %v1962 = vrcp.pop %v1961
        %v1963 = vmul.f32 1.0, %v1962
        %v1964 = vlaneseq
        %v1965 = vshrl.u32 %v1964, 7
        %v1966 = vsub.s32 5, %v1965
        %v1967 = vrot.slane %v1963, %v1966
        %v1968 = vmul.f32 %v1958, %v1967
        %vm1969 = vcmask 392192
        %1970 = vst.msk [vmem:[%s235] sm:$0xff] %vm1969, %v1968
        %s1971 = sand.u32 %s119, 1
        %s1972 = scalar_lea.sflag [#allocation4], %s1971
        %s1973 = sand.u32 %s119, 1
        %s1974 = smul.addr %s1973, 8
        %s1975 = scalar_lea.vmem [#allocation3], %s1974
        %p1976 = scmp.lt.s32.totalorder %s23, 1
        %s1977 = scalar_select %p1976, %s23, 1
        %s1978 = smul.addr %s1977, 2
        %s1979 = smul.addr %s1978, 4
        %s1980 = scalar_lea.vmem %s4, %s1979
        // Predicated region
        $region37: #{tpu_custom_call.1} parent=31 // pred_check
          %p1981 = pneg %p129
        $region38: #{tpu_custom_call.1} parent=31 // pred_check_branch
          %1983 = sbr.rel (%p1981) target = $region40
        $region39: #{tpu_custom_call.1} parent=31 // pred_region
          %s1985 = ssub.s32 128, 128
          %1986 = vsyncadd %s1972, %s1985
          %s1987 = sadd.s32 %s24, %s23
          %s1988 = smul.addr %s1987, 128
          %s1989 = scalar_lea.hbm %s3, %s1988
          %s1991 = sshll.u32 %s1975, 4
          %s1992 = int_to_ptr.vmem [resolvable:$true] %s1991
          %1994 = dma.vmem_to_hbm [thread:$0]  %s1992, 128, %s1989, %s1972
        $region40: #{tpu_custom_call.1} parent=31 // pred_fallthru
          _
        // Predicated region
        $region41: #{tpu_custom_call.1} parent=31 // pred_check
          %p1995 = pneg %p155
        $region42: #{tpu_custom_call.1} parent=31 // pred_check_branch
          %1997 = sbr.rel (%p1995) target = $region44
        $region43: #{tpu_custom_call.1} parent=31 // pred_region
          _
        $region44: #{tpu_custom_call.1} parent=31 // pred_fallthru
          _
      $region32: #{tpu_custom_call.1} parent=5 // pred_fallthru
        _
      %p1998 = scmp.le.s32.totalorder 2, %s14
      // Predicated region
      $region45: #{tpu_custom_call.1} parent=5 // pred_check
        %p1999 = pneg %p1998
      $region46: #{tpu_custom_call.1} parent=5 // pred_check_branch
        %2001 = sbr.rel (%p1999) target = $region48
      $region47: #{tpu_custom_call.1} parent=5 // pred_region
        %s2002 = ssub.s32 %s14, 2
        // Predicated region
        $region49: #{tpu_custom_call.1} parent=47 // pred_check
          %p2003 = pneg %p135
        $region50: #{tpu_custom_call.1} parent=47 // pred_check_branch
          %2005 = sbr.rel (%p2003) target = $region52
        $region51: #{tpu_custom_call.1} parent=47 // pred_region
          %s2006 = sand.u32 %s120, 1
          %s2007 = scalar_lea.sflag [#allocation4], %s2006
          %s2008 = sand.u32 %s120, 1
          %s2009 = smul.addr %s2008, 8
          %s2010 = scalar_lea.vmem [#allocation3], %s2009
          %2011 = dma.done %s2007, 128
        $region52: #{tpu_custom_call.1} parent=47 // pred_fallthru
          _
        // Predicated region
        $region53: #{tpu_custom_call.1} parent=47 // pred_check
          %p2012 = pneg %p161
        $region54: #{tpu_custom_call.1} parent=47 // pred_check_branch
          %2014 = sbr.rel (%p2012) target = $region56
        $region55: #{tpu_custom_call.1} parent=47 // pred_region
          %p2015 = scmp.lt.s32.totalorder %s25, 1
          %s2016 = scalar_select %p2015, %s25, 1
          %s2017 = smul.addr %s2016, 2
          %s2018 = smul.addr %s2017, 4
          %s2019 = scalar_lea.vmem %s4, %s2018
        $region56: #{tpu_custom_call.1} parent=47 // pred_fallthru
          _
      $region48: #{tpu_custom_call.1} parent=5 // pred_fallthru
        _
    $region6: #{tpu_custom_call.1} parent=1 // loop_footer
      %s18 = sadd.s32 1, %s14
    $region7: #{tpu_custom_call.1} parent=1 // loop_footer_branch
      %13 = sbr.rel target = $region3
    $region8: #{tpu_custom_call.1} parent=1 // loop_exit
      _
    %2020 = vsyncpa [#allocation4], 1
    %s2021 = scalar_lea.sflag [#allocation4], 1
    %2022 = vsyncpa %s2021, 1

</llo_original>
